<compile_context>
chip_gen: v5e
topology: v5e:2x2
jax: 0.10.0
libtpu: 0.0.40
codegen_flags: <defaults>
</compile_context>

<pallas_src>
import functools
import math

import jax
import jax.numpy as jnp
from jax import lax
from jax.experimental import pallas as pl
from jax.experimental.pallas import tpu as pltpu


def _round_up(x, m):
    return ((x + m - 1) // m) * m


# ----------------------------------------------------------------------------
# Pallas kernel: one (batch-tile, time-tile) block of the full forward pass
# ----------------------------------------------------------------------------
def _imu_generator_kernel(
    x_ref,                        # (T, Bt, D_in)  time-tile of the input (f32)
    wih0_ref, whh0_ref, b0_ref,   # layer 0:  (D_in, 4H) bf16, (H, 4H) bf16, (1, 4H) f32
    wih1_ref, whh1_ref, b1_ref,   # layer 1
    wih2_ref, whh2_ref, b2_ref,   # layer 2
    wp1_ref, bp1_ref,             # proj 1:   (H, H2) bf16, (1, H2) f32
    wp2_ref, bp2_ref,             # proj 2:   (H2, O_pad) bf16, (1, O_pad) f32
    out_ref,                      # (T, Bt, O_pad) f32
    pg_ref,                       # scratch: (T, Bt, 4H) hoisted pre-gates (f32)
    seq_a, seq_b,                 # scratch: (T, Bt, H) inter-layer hidden sequences (f32)
    h_sc, c_sc,                   # scratch: (3, Bt, H) per-layer carried LSTM state (f32)
    *, pregates_in_regs, loop_unroll,
):
    T, Bt, _ = x_ref.shape
    H = whh0_ref.shape[0]
    lane_sliced_act = (H % 128 == 0)

    # Zero the carried state at the start of every batch tile (time index 0).
    @pl.when(pl.program_id(1) == 0)
    def _init():
        h_sc[...] = jnp.zeros_like(h_sc)
        c_sc[...] = jnp.zeros_like(c_sc)

    def activate(gates):
        # gates: (Bt, 4H) f32, PyTorch gate order i, f, g, o.
        if lane_sliced_act:
            # Lane-aligned slices: halve EUP traffic on the serial chain.
            if_s = jax.nn.sigmoid(gates[:, 0:2 * H])
            i_g = if_s[:, 0:H]
            f_g = if_s[:, H:2 * H]
            g_g = jnp.tanh(gates[:, 2 * H:3 * H])
            o_g = jax.nn.sigmoid(gates[:, 3 * H:4 * H])
        else:
            # Tiny H (4H is ~one vreg): two full-width EUP ops, then slice.
            sig = jax.nn.sigmoid(gates)
            th = jnp.tanh(gates)
            i_g = sig[:, 0:H]
            f_g = sig[:, H:2 * H]
            g_g = th[:, 2 * H:3 * H]
            o_g = sig[:, 3 * H:4 * H]
        return i_g, f_g, g_g, o_g

    def run_lstm_layer(layer, x_seq, w_ih_ref, w_hh_ref, b_ref, out_seq):
        D = x_seq.shape[-1]
        # Hoisted input-to-hidden matmul + bias for the whole tile: one
        # row-dense (T*Bt, D) x (D, 4H) bf16 MXU matmul with f32 accumulation.
        pre = (
            jnp.dot(x_seq.reshape(T * Bt, D).astype(jnp.bfloat16), w_ih_ref[...],
                    preferred_element_type=jnp.float32)
            + b_ref[...]
        )                                                    # (T*Bt, 4H) f32
        w_hh = w_hh_ref[...]                                 # (H, 4H) bf16

        def step(gates_pre, h, c):
            # Only the recurrent matmul stays in the serial chain.
            gates = gates_pre + jnp.dot(h.astype(jnp.bfloat16), w_hh,
                                        preferred_element_type=jnp.float32)
            i_g, f_g, g_g, o_g = activate(gates)
            c_new = f_g * c + i_g * g_g                      # f32 cell state
            h_new = o_g * jnp.tanh(c_new)                    # f32 hidden state
            return h_new, c_new

        if pregates_in_regs:
            # Small tile: keep the pre-gates in registers (static, sublane-
            # aligned slices of `pre`); no per-step VMEM store + reload.
            h = h_sc[layer]
            c = c_sc[layer]
            for t in range(T):
                h, c = step(pre[t * Bt:(t + 1) * Bt, :], h, c)
                out_seq[t] = h
            h_f, c_f = h, c
        else:
            # Large tile: park the pre-gates in VMEM and use a partially
            # unrolled fori_loop (LLO overlap without full-unroll bloat).
            pg_ref[...] = pre.reshape(T, Bt, 4 * H)

            def body(t, carry):
                h, c = carry
                h_new, c_new = step(pg_ref[t], h, c)
                out_seq[t] = h_new
                return (h_new, c_new)

            h_f, c_f = lax.fori_loop(0, T, body,
                                     (h_sc[layer], c_sc[layer]),
                                     unroll=loop_unroll)

        h_sc[layer] = h_f
        c_sc[layer] = c_f

    # Stacked LSTM: layer l consumes layer l-1's hidden sequence for this tile.
    run_lstm_layer(0, x_ref[...], wih0_ref, whh0_ref, b0_ref, seq_a)
    run_lstm_layer(1, seq_a[...], wih1_ref, whh1_ref, b1_ref, seq_b)
    run_lstm_layer(2, seq_b[...], wih2_ref, whh2_ref, b2_ref, seq_a)

    # Output projection: Linear -> ReLU -> (Dropout: identity) -> Linear.
    h_all = seq_a[...].reshape(T * Bt, H).astype(jnp.bfloat16)
    z = jnp.maximum(
        jnp.dot(h_all, wp1_ref[...], preferred_element_type=jnp.float32)
        + bp1_ref[...], 0.0)
    y = (jnp.dot(z.astype(jnp.bfloat16), wp2_ref[...],
                 preferred_element_type=jnp.float32)
         + bp2_ref[...])                                    # (T*Bt, O_pad) f32
    out_ref[...] = y.reshape(T, Bt, out_ref.shape[-1])


# ----------------------------------------------------------------------------
# Wrapper
# ----------------------------------------------------------------------------
def imu_generator_forward(x, params, *, hidden_dim, output_dim,
                          time_tile=None, batch_tile=None):
    """x: (B, S, input_dim) batch-first, like the PyTorch module."""
    B, S, D_in = x.shape
    H = hidden_dim

    # Batch: pad to a sublane multiple; tile so each grid step feeds the MXU
    # with a reasonably full row block (up to 256 rows per step).
    Bp = _round_up(B, 8)
    if batch_tile is None:
        batch_tile = Bp if Bp <= 256 else 256
    B_tile = batch_tile
    Bp = _round_up(Bp, B_tile)
    n_b = Bp // B_tile

    # Output channels padded to a full lane tile -> unmasked lane-dense stores.
    # TODO(synk): on very long sequences on v5e this 6->128 padding inflates
    # HBM writeback; emitting the (T, Bt, H2) activations instead would shrink it.
    O_pad = _round_up(output_dim, 128)

    if time_tile is None:
        time_tile = min(S, 128)
    T_s = time_tile
    n_t = pl.cdiv(S, T_s)
    S_pad = n_t * T_s

    x_tm = jnp.transpose(x.astype(jnp.float32), (1, 0, 2))     # (S, B, D_in)
    x_tm = jnp.pad(x_tm, ((0, S_pad - S), (0, Bp - B), (0, 0)))

    # Lane-dense final projection (zero-padded extra output columns).
    wp2_p = jnp.pad(params["wp2"], ((0, 0), (0, O_pad - output_dim)))
    bp2_p = jnp.pad(params["bp2"], ((0, 0), (0, O_pad - output_dim)))

    bf16 = jnp.bfloat16
    # Weights in bf16 (halves HBM DMA + VMEM residency); biases stay f32 and
    # are added to the f32 MXU accumulators.
    weights = (
        params["wih0"].astype(bf16), params["whh0"].astype(bf16), params["b0"],
        params["wih1"].astype(bf16), params["whh1"].astype(bf16), params["b1"],
        params["wih2"].astype(bf16), params["whh2"].astype(bf16), params["b2"],
        params["wp1"].astype(bf16), params["bp1"],
        wp2_p.astype(bf16), bp2_p,
    )

    # Constant-index weight blocks: single-buffered (no point double-buffering
    # blocks whose index_map never changes -> DMA'd once, one VMEM copy).
    def w_spec(arr):
        nd = arr.ndim
        return pl.BlockSpec(arr.shape, lambda b, t, _nd=nd: (0,) * _nd,
                            pipeline_mode=pl.Buffered(1))

    in_specs = [pl.BlockSpec((T_s, B_tile, D_in), lambda b, t: (t, b, 0))]
    in_specs += [w_spec(w) for w in weights]
    out_specs = pl.BlockSpec((T_s, B_tile, O_pad), lambda b, t: (t, b, 0))

    # Small tiles keep the hoisted pre-gates in registers; large tiles use the
    # VMEM scratch + partially unrolled fori_loop.
    pregates_in_regs = (T_s * B_tile * 4 * H) <= 32 * 1024      # <= 32 f32 vregs
    loop_unroll = min(T_s, 8)

    # Explicit VMEM budget: single-buffered weights + double-buffered I/O
    # blocks + scratch, with headroom; clamped to 64 MiB (safe on v7x).
    weight_bytes = sum(math.prod(w.shape) * w.dtype.itemsize for w in weights)
    io_bytes = 2 * (T_s * B_tile * D_in * 4) + 2 * (T_s * B_tile * O_pad * 4)
    scratch_bytes = (T_s * B_tile * 4 * H + 2 * T_s * B_tile * H
                     + 2 * 3 * B_tile * H) * 4
    est = weight_bytes + io_bytes + scratch_bytes
    vmem_limit = int(min(max(2 * est, 32 * 2**20), 64 * 2**20))

    kernel = functools.partial(_imu_generator_kernel,
                               pregates_in_regs=pregates_in_regs,
                               loop_unroll=loop_unroll)

    y_tm = pl.pallas_call(
        kernel,
        grid=(n_b, n_t),
        out_shape=jax.ShapeDtypeStruct((S_pad, Bp, O_pad), jnp.float32),
        in_specs=in_specs,
        out_specs=out_specs,
        scratch_shapes=[
            pltpu.VMEM((T_s, B_tile, 4 * H), jnp.float32),   # hoisted pre-gates
            pltpu.VMEM((T_s, B_tile, H), jnp.float32),       # seq_a
            pltpu.VMEM((T_s, B_tile, H), jnp.float32),       # seq_b
            pltpu.VMEM((3, B_tile, H), jnp.float32),         # h carry (per layer)
            pltpu.VMEM((3, B_tile, H), jnp.float32),         # c carry (per layer)
        ],
        compiler_params=pltpu.CompilerParams(
            # batch axis parallel (2 TCs on v7x), time axis serial (carried state)
            dimension_semantics=("parallel", "arbitrary"),
            vmem_limit_bytes=vmem_limit),
    )(x_tm, *weights)

    y = jnp.transpose(y_tm, (1, 0, 2))                       # (Bp, S_pad, O_pad)
    return y[:B, :S, :output_dim]


# ----------------------------------------------------------------------------
# Deterministic parameter construction (shapes mirror nn.LSTM / nn.Linear)
# ----------------------------------------------------------------------------
def init_params(key, input_dim, hidden_dim, output_dim, num_layers=3):
    assert num_layers == 3
    H = hidden_dim
    H2 = hidden_dim // 2
    k_lstm = 1.0 / math.sqrt(H)                              # PyTorch LSTM default
    params = {}
    keys = jax.random.split(key, 4 * num_layers + 2)

    for l in range(num_layers):
        d_in = input_dim if l == 0 else H
        kwih, kwhh, kbih, kbhh = keys[4 * l: 4 * l + 4]
        # Stored pre-transposed: (d_in, 4H) and (H, 4H); gate order i,f,g,o.
        params[f"wih{l}"] = jax.random.uniform(kwih, (d_in, 4 * H), jnp.float32, -k_lstm, k_lstm)
        params[f"whh{l}"] = jax.random.uniform(kwhh, (H, 4 * H), jnp.float32, -k_lstm, k_lstm)
        b_ih = jax.random.uniform(kbih, (4 * H,), jnp.float32, -k_lstm, k_lstm)
        b_hh = jax.random.uniform(kbhh, (4 * H,), jnp.float32, -k_lstm, k_lstm)
        params[f"b{l}"] = (b_ih + b_hh).reshape(1, 4 * H)

    # Linear layers: xavier_uniform weights, zero biases (matches _init_weights).
    def xavier(k, shape):
        fan_in, fan_out = shape
        limit = math.sqrt(6.0 / (fan_in + fan_out))
        return jax.random.uniform(k, shape, jnp.float32, -limit, limit)

    params["wp1"] = xavier(keys[-2], (H, H2))
    params["bp1"] = jnp.zeros((1, H2), jnp.float32)
    params["wp2"] = xavier(keys[-1], (H2, output_dim))
    params["bp2"] = jnp.zeros((1, output_dim), jnp.float32)
    return params


# ----------------------------------------------------------------------------
# Pure-JAX reference (same math; matmul operands cast like the kernel)
# ----------------------------------------------------------------------------
def reference_forward(x, params, *, hidden_dim, output_dim, num_layers=3,
                      matmul_dtype=jnp.bfloat16):
    B, S, _ = x.shape
    H = hidden_dim
    md = matmul_dtype
    seq = x.astype(jnp.float32)
    for l in range(num_layers):
        w_ih = params[f"wih{l}"].astype(md)
        w_hh = params[f"whh{l}"].astype(md)
        b = params[f"b{l}"]
        h = jnp.zeros((B, H), jnp.float32)
        c = jnp.zeros((B, H), jnp.float32)
        outs = []
        for t in range(S):
            gates = (jnp.dot(seq[:, t, :].astype(md), w_ih,
                             preferred_element_type=jnp.float32)
                     + jnp.dot(h.astype(md), w_hh,
                               preferred_element_type=jnp.float32)
                     + b)
            i_g = jax.nn.sigmoid(gates[:, 0 * H:1 * H])
            f_g = jax.nn.sigmoid(gates[:, 1 * H:2 * H])
            g_g = jnp.tanh(gates[:, 2 * H:3 * H])
            o_g = jax.nn.sigmoid(gates[:, 3 * H:4 * H])
            c = f_g * c + i_g * g_g
            h = o_g * jnp.tanh(c)
            outs.append(h)
        seq = jnp.stack(outs, axis=1)
    z = jnp.maximum(
        jnp.dot(seq.astype(md), params["wp1"].astype(md),
                preferred_element_type=jnp.float32) + params["bp1"], 0.0)
    return (jnp.dot(z.astype(md), params["wp2"].astype(md),
                    preferred_element_type=jnp.float32) + params["bp2"])


if __name__ == "__main__":
    # Small shapes consistent with the module's forward contract.
    batch, seq_len = 2, 8
    input_dim, hidden_dim, output_dim = 13, 32, 6

    key = jax.random.PRNGKey(0)
    k_x, k_p = jax.random.split(key)
    x = jax.random.normal(k_x, (batch, seq_len, input_dim), jnp.float32)
    params = init_params(k_p, input_dim, hidden_dim, output_dim)

    # time_tile=4 -> 2 time tiles, exercising the carried h/c state across tiles.
    fwd = jax.jit(functools.partial(
        imu_generator_forward, hidden_dim=hidden_dim, output_dim=output_dim,
        time_tile=4))
    y = fwd(x, params)
    jax.block_until_ready(y)

    assert y.shape == (batch, seq_len, output_dim)
    y_ref = reference_forward(x, params, hidden_dim=hidden_dim,
                              output_dim=output_dim)
    assert jnp.allclose(y, y_ref, atol=2e-3, rtol=2e-3), "mismatch vs JAX reference"

    print("KERNEL_OK")
</pallas_src>

<mosaic_0001>
module attributes {stable_mosaic.version = 11 : i64} {
  func.func @_imu_generator_kernel(%arg0: i32, %arg1: i32, %arg2: memref<4x8x13xf32, #tpu.memory_space<vmem>>, %arg3: memref<13x128xbf16, #tpu.memory_space<vmem>>, %arg4: memref<32x128xbf16, #tpu.memory_space<vmem>>, %arg5: memref<1x128xf32, #tpu.memory_space<vmem>>, %arg6: memref<32x128xbf16, #tpu.memory_space<vmem>>, %arg7: memref<32x128xbf16, #tpu.memory_space<vmem>>, %arg8: memref<1x128xf32, #tpu.memory_space<vmem>>, %arg9: memref<32x128xbf16, #tpu.memory_space<vmem>>, %arg10: memref<32x128xbf16, #tpu.memory_space<vmem>>, %arg11: memref<1x128xf32, #tpu.memory_space<vmem>>, %arg12: memref<32x16xbf16, #tpu.memory_space<vmem>>, %arg13: memref<1x16xf32, #tpu.memory_space<vmem>>, %arg14: memref<16x128xbf16, #tpu.memory_space<vmem>>, %arg15: memref<1x128xf32, #tpu.memory_space<vmem>>, %arg16: memref<4x8x128xf32, #tpu.memory_space<vmem>>, %arg17: memref<4x8x128xf32, #tpu.memory_space<vmem>>, %arg18: memref<4x8x32xf32, #tpu.memory_space<vmem>>, %arg19: memref<4x8x32xf32, #tpu.memory_space<vmem>>, %arg20: memref<3x8x32xf32, #tpu.memory_space<vmem>>, %arg21: memref<3x8x32xf32, #tpu.memory_space<vmem>>) attributes {dimension_semantics = [#tpu.dimension_semantics<parallel>, #tpu.dimension_semantics<arbitrary>], iteration_bounds = array<i64: 1, 2>, scalar_prefetch = 0 : i64, scratch_operands = 5 : i64, tpu.core_type = #tpu.core_type<tc>, window_params = [{transform_indices = @transform_0, window_bounds = array<i64: 4, 8, 13>}, {pipeline_mode = #tpu.pipeline_mode<synchronous>, transform_indices = @transform_1, window_bounds = array<i64: 13, 128>}, {pipeline_mode = #tpu.pipeline_mode<synchronous>, transform_indices = @transform_2, window_bounds = array<i64: 32, 128>}, {pipeline_mode = #tpu.pipeline_mode<synchronous>, transform_indices = @transform_3, window_bounds = array<i64: 1, 128>}, {pipeline_mode = #tpu.pipeline_mode<synchronous>, transform_indices = @transform_4, window_bounds = array<i64: 32, 128>}, {pipeline_mode = #tpu.pipeline_mode<synchronous>, transform_indices = @transform_5, window_bounds = array<i64: 32, 128>}, {pipeline_mode = #tpu.pipeline_mode<synchronous>, transform_indices = @transform_6, window_bounds = array<i64: 1, 128>}, {pipeline_mode = #tpu.pipeline_mode<synchronous>, transform_indices = @transform_7, window_bounds = array<i64: 32, 128>}, {pipeline_mode = #tpu.pipeline_mode<synchronous>, transform_indices = @transform_8, window_bounds = array<i64: 32, 128>}, {pipeline_mode = #tpu.pipeline_mode<synchronous>, transform_indices = @transform_9, window_bounds = array<i64: 1, 128>}, {pipeline_mode = #tpu.pipeline_mode<synchronous>, transform_indices = @transform_10, window_bounds = array<i64: 32, 16>}, {pipeline_mode = #tpu.pipeline_mode<synchronous>, transform_indices = @transform_11, window_bounds = array<i64: 1, 16>}, {pipeline_mode = #tpu.pipeline_mode<synchronous>, transform_indices = @transform_12, window_bounds = array<i64: 16, 128>}, {pipeline_mode = #tpu.pipeline_mode<synchronous>, transform_indices = @transform_13, window_bounds = array<i64: 1, 128>}, {transform_indices = @transform_14, window_bounds = array<i64: 4, 8, 128>}]} {
    %c0_i32 = arith.constant 0 : i32
    %0 = arith.cmpi eq, %arg1, %c0_i32 : i32
    %1 = arith.extui %0 : i1 to i32
    %c0_i32_0 = arith.constant 0 : i32
    %2 = arith.cmpi ne, %1, %c0_i32_0 : i32
    scf.if %2 {
      %cst_139 = arith.constant 0.000000e+00 : f32
      %342 = vector.broadcast %cst_139 : f32 to vector<3x8x32xf32>
      %c0_140 = arith.constant 0 : index
      %c0_141 = arith.constant 0 : index
      %c0_142 = arith.constant 0 : index
      %343 = vector.load %arg20[%c0_140, %c0_141, %c0_142] : memref<3x8x32xf32, #tpu.memory_space<vmem>>, vector<3x8x32xf32>
      tpu.vector_store %arg20[%c0_140, %c0_141, %c0_142], %342 {strides = array<i32>} : memref<3x8x32xf32, #tpu.memory_space<vmem>>, vector<3x8x32xf32>,
      %cst_143 = arith.constant 0.000000e+00 : f32
      %344 = vector.broadcast %cst_143 : f32 to vector<3x8x32xf32>
      %c0_144 = arith.constant 0 : index
      %c0_145 = arith.constant 0 : index
      %c0_146 = arith.constant 0 : index
      %345 = vector.load %arg21[%c0_144, %c0_145, %c0_146] : memref<3x8x32xf32, #tpu.memory_space<vmem>>, vector<3x8x32xf32>
      tpu.vector_store %arg21[%c0_144, %c0_145, %c0_146], %344 {strides = array<i32>} : memref<3x8x32xf32, #tpu.memory_space<vmem>>, vector<3x8x32xf32>,
    } else {
    }
    %c0 = arith.constant 0 : index
    %c0_1 = arith.constant 0 : index
    %c0_2 = arith.constant 0 : index
    %3 = vector.load %arg2[%c0, %c0_1, %c0_2] : memref<4x8x13xf32, #tpu.memory_space<vmem>>, vector<4x8x13xf32>
    %4 = vector.shape_cast %3 : vector<4x8x13xf32> to vector<32x13xf32>
    %5 = arith.truncf %4 : vector<32x13xf32> to vector<32x13xbf16>
    %c0_3 = arith.constant 0 : index
    %c0_4 = arith.constant 0 : index
    %6 = vector.load %arg3[%c0_3, %c0_4] : memref<13x128xbf16, #tpu.memory_space<vmem>>, vector<13x128xbf16>
    %cst = arith.constant dense<0.000000e+00> : vector<32x128xf32>
    %7 = tpu.matmul %5, %6, %cst {dimension_numbers = #tpu.dot_dimension_numbers<[1], [0], [0], [1], [0, 0, 1, 1], [], []>} : vector<32x13xbf16>, vector<13x128xbf16>, vector<32x128xf32> -> vector<32x128xf32>
    %c0_5 = arith.constant 0 : index
    %c0_6 = arith.constant 0 : index
    %8 = vector.load %arg5[%c0_5, %c0_6] : memref<1x128xf32, #tpu.memory_space<vmem>>, vector<1x128xf32>
    %9 = vector.broadcast %8 : vector<1x128xf32> to vector<32x128xf32>
    %10 = arith.addf %7, %9 : vector<32x128xf32>
    %c0_7 = arith.constant 0 : index
    %c0_8 = arith.constant 0 : index
    %11 = vector.load %arg4[%c0_7, %c0_8] : memref<32x128xbf16, #tpu.memory_space<vmem>>, vector<32x128xbf16>
    %c0_9 = arith.constant 0 : index
    %c0_10 = arith.constant 0 : index
    %c0_11 = arith.constant 0 : index
    %12 = vector.load %arg20[%c0_9, %c0_10, %c0_11] : memref<3x8x32xf32, #tpu.memory_space<vmem>>, vector<1x8x32xf32>
    %13 = vector.shape_cast %12 : vector<1x8x32xf32> to vector<8x32xf32>
    %c0_12 = arith.constant 0 : index
    %c0_13 = arith.constant 0 : index
    %c0_14 = arith.constant 0 : index
    %14 = vector.load %arg21[%c0_12, %c0_13, %c0_14] : memref<3x8x32xf32, #tpu.memory_space<vmem>>, vector<1x8x32xf32>
    %15 = vector.shape_cast %14 : vector<1x8x32xf32> to vector<8x32xf32>
    %16 = vector.extract_strided_slice %10 {offsets = [0, 0], sizes = [8, 128], strides = [1, 1]} : vector<32x128xf32> to vector<8x128xf32>
    %17 = arith.truncf %13 : vector<8x32xf32> to vector<8x32xbf16>
    %cst_15 = arith.constant dense<0.000000e+00> : vector<8x128xf32>
    %18 = tpu.matmul %17, %11, %cst_15 {dimension_numbers = #tpu.dot_dimension_numbers<[1], [0], [0], [1], [0, 0, 1, 1], [], []>} : vector<8x32xbf16>, vector<32x128xbf16>, vector<8x128xf32> -> vector<8x128xf32>
    %19 = arith.addf %16, %18 : vector<8x128xf32>
    %20 = arith.negf %19 : vector<8x128xf32>
    %21 = math.exp %20 : vector<8x128xf32>
    %cst_16 = arith.constant 1.000000e+00 : f32
    %22 = vector.broadcast %cst_16 : f32 to vector<8x128xf32>
    %23 = arith.addf %22, %21 : vector<8x128xf32>
    %24 = arith.divf %22, %23 : vector<8x128xf32>
    %25 = math.tanh %19 : vector<8x128xf32>
    %26 = vector.extract_strided_slice %24 {offsets = [0, 0], sizes = [8, 32], strides = [1, 1]} : vector<8x128xf32> to vector<8x32xf32>
    %27 = vector.extract_strided_slice %24 {offsets = [0, 32], sizes = [8, 32], strides = [1, 1]} : vector<8x128xf32> to vector<8x32xf32>
    %28 = vector.extract_strided_slice %25 {offsets = [0, 64], sizes = [8, 32], strides = [1, 1]} : vector<8x128xf32> to vector<8x32xf32>
    %29 = vector.extract_strided_slice %24 {offsets = [0, 96], sizes = [8, 32], strides = [1, 1]} : vector<8x128xf32> to vector<8x32xf32>
    %30 = arith.mulf %27, %15 : vector<8x32xf32>
    %31 = arith.mulf %26, %28 : vector<8x32xf32>
    %32 = arith.addf %30, %31 : vector<8x32xf32>
    %33 = math.tanh %32 : vector<8x32xf32>
    %34 = arith.mulf %29, %33 : vector<8x32xf32>
    %c0_17 = arith.constant 0 : index
    %c0_18 = arith.constant 0 : index
    %c0_19 = arith.constant 0 : index
    %35 = vector.load %arg18[%c0_17, %c0_18, %c0_19] : memref<4x8x32xf32, #tpu.memory_space<vmem>>, vector<1x8x32xf32>
    %36 = vector.shape_cast %35 : vector<1x8x32xf32> to vector<8x32xf32>
    %37 = vector.shape_cast %34 : vector<8x32xf32> to vector<1x8x32xf32>
    tpu.vector_store %arg18[%c0_17, %c0_18, %c0_19], %37 {strides = array<i32>} : memref<4x8x32xf32, #tpu.memory_space<vmem>>, vector<1x8x32xf32>,
    %38 = vector.extract_strided_slice %10 {offsets = [8, 0], sizes = [8, 128], strides = [1, 1]} : vector<32x128xf32> to vector<8x128xf32>
    %39 = arith.truncf %34 : vector<8x32xf32> to vector<8x32xbf16>
    %cst_20 = arith.constant dense<0.000000e+00> : vector<8x128xf32>
    %40 = tpu.matmul %39, %11, %cst_20 {dimension_numbers = #tpu.dot_dimension_numbers<[1], [0], [0], [1], [0, 0, 1, 1], [], []>} : vector<8x32xbf16>, vector<32x128xbf16>, vector<8x128xf32> -> vector<8x128xf32>
    %41 = arith.addf %38, %40 : vector<8x128xf32>
    %42 = arith.negf %41 : vector<8x128xf32>
    %43 = math.exp %42 : vector<8x128xf32>
    %cst_21 = arith.constant 1.000000e+00 : f32
    %44 = vector.broadcast %cst_21 : f32 to vector<8x128xf32>
    %45 = arith.addf %44, %43 : vector<8x128xf32>
    %46 = arith.divf %44, %45 : vector<8x128xf32>
    %47 = math.tanh %41 : vector<8x128xf32>
    %48 = vector.extract_strided_slice %46 {offsets = [0, 0], sizes = [8, 32], strides = [1, 1]} : vector<8x128xf32> to vector<8x32xf32>
    %49 = vector.extract_strided_slice %46 {offsets = [0, 32], sizes = [8, 32], strides = [1, 1]} : vector<8x128xf32> to vector<8x32xf32>
    %50 = vector.extract_strided_slice %47 {offsets = [0, 64], sizes = [8, 32], strides = [1, 1]} : vector<8x128xf32> to vector<8x32xf32>
    %51 = vector.extract_strided_slice %46 {offsets = [0, 96], sizes = [8, 32], strides = [1, 1]} : vector<8x128xf32> to vector<8x32xf32>
    %52 = arith.mulf %49, %32 : vector<8x32xf32>
    %53 = arith.mulf %48, %50 : vector<8x32xf32>
    %54 = arith.addf %52, %53 : vector<8x32xf32>
    %55 = math.tanh %54 : vector<8x32xf32>
    %56 = arith.mulf %51, %55 : vector<8x32xf32>
    %c1 = arith.constant 1 : index
    %c0_22 = arith.constant 0 : index
    %c0_23 = arith.constant 0 : index
    %57 = vector.load %arg18[%c1, %c0_22, %c0_23] : memref<4x8x32xf32, #tpu.memory_space<vmem>>, vector<1x8x32xf32>
    %58 = vector.shape_cast %57 : vector<1x8x32xf32> to vector<8x32xf32>
    %59 = vector.shape_cast %56 : vector<8x32xf32> to vector<1x8x32xf32>
    tpu.vector_store %arg18[%c1, %c0_22, %c0_23], %59 {strides = array<i32>} : memref<4x8x32xf32, #tpu.memory_space<vmem>>, vector<1x8x32xf32>,
    %60 = vector.extract_strided_slice %10 {offsets = [16, 0], sizes = [8, 128], strides = [1, 1]} : vector<32x128xf32> to vector<8x128xf32>
    %61 = arith.truncf %56 : vector<8x32xf32> to vector<8x32xbf16>
    %cst_24 = arith.constant dense<0.000000e+00> : vector<8x128xf32>
    %62 = tpu.matmul %61, %11, %cst_24 {dimension_numbers = #tpu.dot_dimension_numbers<[1], [0], [0], [1], [0, 0, 1, 1], [], []>} : vector<8x32xbf16>, vector<32x128xbf16>, vector<8x128xf32> -> vector<8x128xf32>
    %63 = arith.addf %60, %62 : vector<8x128xf32>
    %64 = arith.negf %63 : vector<8x128xf32>
    %65 = math.exp %64 : vector<8x128xf32>
    %cst_25 = arith.constant 1.000000e+00 : f32
    %66 = vector.broadcast %cst_25 : f32 to vector<8x128xf32>
    %67 = arith.addf %66, %65 : vector<8x128xf32>
    %68 = arith.divf %66, %67 : vector<8x128xf32>
    %69 = math.tanh %63 : vector<8x128xf32>
    %70 = vector.extract_strided_slice %68 {offsets = [0, 0], sizes = [8, 32], strides = [1, 1]} : vector<8x128xf32> to vector<8x32xf32>
    %71 = vector.extract_strided_slice %68 {offsets = [0, 32], sizes = [8, 32], strides = [1, 1]} : vector<8x128xf32> to vector<8x32xf32>
    %72 = vector.extract_strided_slice %69 {offsets = [0, 64], sizes = [8, 32], strides = [1, 1]} : vector<8x128xf32> to vector<8x32xf32>
    %73 = vector.extract_strided_slice %68 {offsets = [0, 96], sizes = [8, 32], strides = [1, 1]} : vector<8x128xf32> to vector<8x32xf32>
    %74 = arith.mulf %71, %54 : vector<8x32xf32>
    %75 = arith.mulf %70, %72 : vector<8x32xf32>
    %76 = arith.addf %74, %75 : vector<8x32xf32>
    %77 = math.tanh %76 : vector<8x32xf32>
    %78 = arith.mulf %73, %77 : vector<8x32xf32>
    %c2 = arith.constant 2 : index
    %c0_26 = arith.constant 0 : index
    %c0_27 = arith.constant 0 : index
    %79 = vector.load %arg18[%c2, %c0_26, %c0_27] : memref<4x8x32xf32, #tpu.memory_space<vmem>>, vector<1x8x32xf32>
    %80 = vector.shape_cast %79 : vector<1x8x32xf32> to vector<8x32xf32>
    %81 = vector.shape_cast %78 : vector<8x32xf32> to vector<1x8x32xf32>
    tpu.vector_store %arg18[%c2, %c0_26, %c0_27], %81 {strides = array<i32>} : memref<4x8x32xf32, #tpu.memory_space<vmem>>, vector<1x8x32xf32>,
    %82 = vector.extract_strided_slice %10 {offsets = [24, 0], sizes = [8, 128], strides = [1, 1]} : vector<32x128xf32> to vector<8x128xf32>
    %83 = arith.truncf %78 : vector<8x32xf32> to vector<8x32xbf16>
    %cst_28 = arith.constant dense<0.000000e+00> : vector<8x128xf32>
    %84 = tpu.matmul %83, %11, %cst_28 {dimension_numbers = #tpu.dot_dimension_numbers<[1], [0], [0], [1], [0, 0, 1, 1], [], []>} : vector<8x32xbf16>, vector<32x128xbf16>, vector<8x128xf32> -> vector<8x128xf32>
    %85 = arith.addf %82, %84 : vector<8x128xf32>
    %86 = arith.negf %85 : vector<8x128xf32>
    %87 = math.exp %86 : vector<8x128xf32>
    %cst_29 = arith.constant 1.000000e+00 : f32
    %88 = vector.broadcast %cst_29 : f32 to vector<8x128xf32>
    %89 = arith.addf %88, %87 : vector<8x128xf32>
    %90 = arith.divf %88, %89 : vector<8x128xf32>
    %91 = math.tanh %85 : vector<8x128xf32>
    %92 = vector.extract_strided_slice %90 {offsets = [0, 0], sizes = [8, 32], strides = [1, 1]} : vector<8x128xf32> to vector<8x32xf32>
    %93 = vector.extract_strided_slice %90 {offsets = [0, 32], sizes = [8, 32], strides = [1, 1]} : vector<8x128xf32> to vector<8x32xf32>
    %94 = vector.extract_strided_slice %91 {offsets = [0, 64], sizes = [8, 32], strides = [1, 1]} : vector<8x128xf32> to vector<8x32xf32>
    %95 = vector.extract_strided_slice %90 {offsets = [0, 96], sizes = [8, 32], strides = [1, 1]} : vector<8x128xf32> to vector<8x32xf32>
    %96 = arith.mulf %93, %76 : vector<8x32xf32>
    %97 = arith.mulf %92, %94 : vector<8x32xf32>
    %98 = arith.addf %96, %97 : vector<8x32xf32>
    %99 = math.tanh %98 : vector<8x32xf32>
    %100 = arith.mulf %95, %99 : vector<8x32xf32>
    %c3 = arith.constant 3 : index
    %c0_30 = arith.constant 0 : index
    %c0_31 = arith.constant 0 : index
    %101 = vector.load %arg18[%c3, %c0_30, %c0_31] : memref<4x8x32xf32, #tpu.memory_space<vmem>>, vector<1x8x32xf32>
    %102 = vector.shape_cast %101 : vector<1x8x32xf32> to vector<8x32xf32>
    %103 = vector.shape_cast %100 : vector<8x32xf32> to vector<1x8x32xf32>
    tpu.vector_store %arg18[%c3, %c0_30, %c0_31], %103 {strides = array<i32>} : memref<4x8x32xf32, #tpu.memory_space<vmem>>, vector<1x8x32xf32>,
    %c0_32 = arith.constant 0 : index
    %c0_33 = arith.constant 0 : index
    %c0_34 = arith.constant 0 : index
    %104 = vector.load %arg20[%c0_32, %c0_33, %c0_34] : memref<3x8x32xf32, #tpu.memory_space<vmem>>, vector<1x8x32xf32>
    %105 = vector.shape_cast %104 : vector<1x8x32xf32> to vector<8x32xf32>
    %106 = vector.shape_cast %100 : vector<8x32xf32> to vector<1x8x32xf32>
    tpu.vector_store %arg20[%c0_32, %c0_33, %c0_34], %106 {strides = array<i32>} : memref<3x8x32xf32, #tpu.memory_space<vmem>>, vector<1x8x32xf32>,
    %c0_35 = arith.constant 0 : index
    %c0_36 = arith.constant 0 : index
    %c0_37 = arith.constant 0 : index
    %107 = vector.load %arg21[%c0_35, %c0_36, %c0_37] : memref<3x8x32xf32, #tpu.memory_space<vmem>>, vector<1x8x32xf32>
    %108 = vector.shape_cast %107 : vector<1x8x32xf32> to vector<8x32xf32>
    %109 = vector.shape_cast %98 : vector<8x32xf32> to vector<1x8x32xf32>
    tpu.vector_store %arg21[%c0_35, %c0_36, %c0_37], %109 {strides = array<i32>} : memref<3x8x32xf32, #tpu.memory_space<vmem>>, vector<1x8x32xf32>,
    %c0_38 = arith.constant 0 : index
    %c0_39 = arith.constant 0 : index
    %c0_40 = arith.constant 0 : index
    %110 = vector.load %arg18[%c0_38, %c0_39, %c0_40] : memref<4x8x32xf32, #tpu.memory_space<vmem>>, vector<4x8x32xf32>
    %111 = vector.shape_cast %110 : vector<4x8x32xf32> to vector<32x32xf32>
    %112 = arith.truncf %111 : vector<32x32xf32> to vector<32x32xbf16>
    %c0_41 = arith.constant 0 : index
    %c0_42 = arith.constant 0 : index
    %113 = vector.load %arg6[%c0_41, %c0_42] : memref<32x128xbf16, #tpu.memory_space<vmem>>, vector<32x128xbf16>
    %cst_43 = arith.constant dense<0.000000e+00> : vector<32x128xf32>
    %114 = tpu.matmul %112, %113, %cst_43 {dimension_numbers = #tpu.dot_dimension_numbers<[1], [0], [0], [1], [0, 0, 1, 1], [], []>} : vector<32x32xbf16>, vector<32x128xbf16>, vector<32x128xf32> -> vector<32x128xf32>
    %c0_44 = arith.constant 0 : index
    %c0_45 = arith.constant 0 : index
    %115 = vector.load %arg8[%c0_44, %c0_45] : memref<1x128xf32, #tpu.memory_space<vmem>>, vector<1x128xf32>
    %116 = vector.broadcast %115 : vector<1x128xf32> to vector<32x128xf32>
    %117 = arith.addf %114, %116 : vector<32x128xf32>
    %c0_46 = arith.constant 0 : index
    %c0_47 = arith.constant 0 : index
    %118 = vector.load %arg7[%c0_46, %c0_47] : memref<32x128xbf16, #tpu.memory_space<vmem>>, vector<32x128xbf16>
    %c1_48 = arith.constant 1 : index
    %c0_49 = arith.constant 0 : index
    %c0_50 = arith.constant 0 : index
    %119 = vector.load %arg20[%c1_48, %c0_49, %c0_50] : memref<3x8x32xf32, #tpu.memory_space<vmem>>, vector<1x8x32xf32>
    %120 = vector.shape_cast %119 : vector<1x8x32xf32> to vector<8x32xf32>
    %c1_51 = arith.constant 1 : index
    %c0_52 = arith.constant 0 : index
    %c0_53 = arith.constant 0 : index
    %121 = vector.load %arg21[%c1_51, %c0_52, %c0_53] : memref<3x8x32xf32, #tpu.memory_space<vmem>>, vector<1x8x32xf32>
    %122 = vector.shape_cast %121 : vector<1x8x32xf32> to vector<8x32xf32>
    %123 = vector.extract_strided_slice %117 {offsets = [0, 0], sizes = [8, 128], strides = [1, 1]} : vector<32x128xf32> to vector<8x128xf32>
    %124 = arith.truncf %120 : vector<8x32xf32> to vector<8x32xbf16>
    %cst_54 = arith.constant dense<0.000000e+00> : vector<8x128xf32>
    %125 = tpu.matmul %124, %118, %cst_54 {dimension_numbers = #tpu.dot_dimension_numbers<[1], [0], [0], [1], [0, 0, 1, 1], [], []>} : vector<8x32xbf16>, vector<32x128xbf16>, vector<8x128xf32> -> vector<8x128xf32>
    %126 = arith.addf %123, %125 : vector<8x128xf32>
    %127 = arith.negf %126 : vector<8x128xf32>
    %128 = math.exp %127 : vector<8x128xf32>
    %cst_55 = arith.constant 1.000000e+00 : f32
    %129 = vector.broadcast %cst_55 : f32 to vector<8x128xf32>
    %130 = arith.addf %129, %128 : vector<8x128xf32>
    %131 = arith.divf %129, %130 : vector<8x128xf32>
    %132 = math.tanh %126 : vector<8x128xf32>
    %133 = vector.extract_strided_slice %131 {offsets = [0, 0], sizes = [8, 32], strides = [1, 1]} : vector<8x128xf32> to vector<8x32xf32>
    %134 = vector.extract_strided_slice %131 {offsets = [0, 32], sizes = [8, 32], strides = [1, 1]} : vector<8x128xf32> to vector<8x32xf32>
    %135 = vector.extract_strided_slice %132 {offsets = [0, 64], sizes = [8, 32], strides = [1, 1]} : vector<8x128xf32> to vector<8x32xf32>
    %136 = vector.extract_strided_slice %131 {offsets = [0, 96], sizes = [8, 32], strides = [1, 1]} : vector<8x128xf32> to vector<8x32xf32>
    %137 = arith.mulf %134, %122 : vector<8x32xf32>
    %138 = arith.mulf %133, %135 : vector<8x32xf32>
    %139 = arith.addf %137, %138 : vector<8x32xf32>
    %140 = math.tanh %139 : vector<8x32xf32>
    %141 = arith.mulf %136, %140 : vector<8x32xf32>
    %c0_56 = arith.constant 0 : index
    %c0_57 = arith.constant 0 : index
    %c0_58 = arith.constant 0 : index
    %142 = vector.load %arg19[%c0_56, %c0_57, %c0_58] : memref<4x8x32xf32, #tpu.memory_space<vmem>>, vector<1x8x32xf32>
    %143 = vector.shape_cast %142 : vector<1x8x32xf32> to vector<8x32xf32>
    %144 = vector.shape_cast %141 : vector<8x32xf32> to vector<1x8x32xf32>
    tpu.vector_store %arg19[%c0_56, %c0_57, %c0_58], %144 {strides = array<i32>} : memref<4x8x32xf32, #tpu.memory_space<vmem>>, vector<1x8x32xf32>,
    %145 = vector.extract_strided_slice %117 {offsets = [8, 0], sizes = [8, 128], strides = [1, 1]} : vector<32x128xf32> to vector<8x128xf32>
    %146 = arith.truncf %141 : vector<8x32xf32> to vector<8x32xbf16>
    %cst_59 = arith.constant dense<0.000000e+00> : vector<8x128xf32>
    %147 = tpu.matmul %146, %118, %cst_59 {dimension_numbers = #tpu.dot_dimension_numbers<[1], [0], [0], [1], [0, 0, 1, 1], [], []>} : vector<8x32xbf16>, vector<32x128xbf16>, vector<8x128xf32> -> vector<8x128xf32>
    %148 = arith.addf %145, %147 : vector<8x128xf32>
    %149 = arith.negf %148 : vector<8x128xf32>
    %150 = math.exp %149 : vector<8x128xf32>
    %cst_60 = arith.constant 1.000000e+00 : f32
    %151 = vector.broadcast %cst_60 : f32 to vector<8x128xf32>
    %152 = arith.addf %151, %150 : vector<8x128xf32>
    %153 = arith.divf %151, %152 : vector<8x128xf32>
    %154 = math.tanh %148 : vector<8x128xf32>
    %155 = vector.extract_strided_slice %153 {offsets = [0, 0], sizes = [8, 32], strides = [1, 1]} : vector<8x128xf32> to vector<8x32xf32>
    %156 = vector.extract_strided_slice %153 {offsets = [0, 32], sizes = [8, 32], strides = [1, 1]} : vector<8x128xf32> to vector<8x32xf32>
    %157 = vector.extract_strided_slice %154 {offsets = [0, 64], sizes = [8, 32], strides = [1, 1]} : vector<8x128xf32> to vector<8x32xf32>
    %158 = vector.extract_strided_slice %153 {offsets = [0, 96], sizes = [8, 32], strides = [1, 1]} : vector<8x128xf32> to vector<8x32xf32>
    %159 = arith.mulf %156, %139 : vector<8x32xf32>
    %160 = arith.mulf %155, %157 : vector<8x32xf32>
    %161 = arith.addf %159, %160 : vector<8x32xf32>
    %162 = math.tanh %161 : vector<8x32xf32>
    %163 = arith.mulf %158, %162 : vector<8x32xf32>
    %c1_61 = arith.constant 1 : index
    %c0_62 = arith.constant 0 : index
    %c0_63 = arith.constant 0 : index
    %164 = vector.load %arg19[%c1_61, %c0_62, %c0_63] : memref<4x8x32xf32, #tpu.memory_space<vmem>>, vector<1x8x32xf32>
    %165 = vector.shape_cast %164 : vector<1x8x32xf32> to vector<8x32xf32>
    %166 = vector.shape_cast %163 : vector<8x32xf32> to vector<1x8x32xf32>
    tpu.vector_store %arg19[%c1_61, %c0_62, %c0_63], %166 {strides = array<i32>} : memref<4x8x32xf32, #tpu.memory_space<vmem>>, vector<1x8x32xf32>,
    %167 = vector.extract_strided_slice %117 {offsets = [16, 0], sizes = [8, 128], strides = [1, 1]} : vector<32x128xf32> to vector<8x128xf32>
    %168 = arith.truncf %163 : vector<8x32xf32> to vector<8x32xbf16>
    %cst_64 = arith.constant dense<0.000000e+00> : vector<8x128xf32>
    %169 = tpu.matmul %168, %118, %cst_64 {dimension_numbers = #tpu.dot_dimension_numbers<[1], [0], [0], [1], [0, 0, 1, 1], [], []>} : vector<8x32xbf16>, vector<32x128xbf16>, vector<8x128xf32> -> vector<8x128xf32>
    %170 = arith.addf %167, %169 : vector<8x128xf32>
    %171 = arith.negf %170 : vector<8x128xf32>
    %172 = math.exp %171 : vector<8x128xf32>
    %cst_65 = arith.constant 1.000000e+00 : f32
    %173 = vector.broadcast %cst_65 : f32 to vector<8x128xf32>
    %174 = arith.addf %173, %172 : vector<8x128xf32>
    %175 = arith.divf %173, %174 : vector<8x128xf32>
    %176 = math.tanh %170 : vector<8x128xf32>
    %177 = vector.extract_strided_slice %175 {offsets = [0, 0], sizes = [8, 32], strides = [1, 1]} : vector<8x128xf32> to vector<8x32xf32>
    %178 = vector.extract_strided_slice %175 {offsets = [0, 32], sizes = [8, 32], strides = [1, 1]} : vector<8x128xf32> to vector<8x32xf32>
    %179 = vector.extract_strided_slice %176 {offsets = [0, 64], sizes = [8, 32], strides = [1, 1]} : vector<8x128xf32> to vector<8x32xf32>
    %180 = vector.extract_strided_slice %175 {offsets = [0, 96], sizes = [8, 32], strides = [1, 1]} : vector<8x128xf32> to vector<8x32xf32>
    %181 = arith.mulf %178, %161 : vector<8x32xf32>
    %182 = arith.mulf %177, %179 : vector<8x32xf32>
    %183 = arith.addf %181, %182 : vector<8x32xf32>
    %184 = math.tanh %183 : vector<8x32xf32>
    %185 = arith.mulf %180, %184 : vector<8x32xf32>
    %c2_66 = arith.constant 2 : index
    %c0_67 = arith.constant 0 : index
    %c0_68 = arith.constant 0 : index
    %186 = vector.load %arg19[%c2_66, %c0_67, %c0_68] : memref<4x8x32xf32, #tpu.memory_space<vmem>>, vector<1x8x32xf32>
    %187 = vector.shape_cast %186 : vector<1x8x32xf32> to vector<8x32xf32>
    %188 = vector.shape_cast %185 : vector<8x32xf32> to vector<1x8x32xf32>
    tpu.vector_store %arg19[%c2_66, %c0_67, %c0_68], %188 {strides = array<i32>} : memref<4x8x32xf32, #tpu.memory_space<vmem>>, vector<1x8x32xf32>,
    %189 = vector.extract_strided_slice %117 {offsets = [24, 0], sizes = [8, 128], strides = [1, 1]} : vector<32x128xf32> to vector<8x128xf32>
    %190 = arith.truncf %185 : vector<8x32xf32> to vector<8x32xbf16>
    %cst_69 = arith.constant dense<0.000000e+00> : vector<8x128xf32>
    %191 = tpu.matmul %190, %118, %cst_69 {dimension_numbers = #tpu.dot_dimension_numbers<[1], [0], [0], [1], [0, 0, 1, 1], [], []>} : vector<8x32xbf16>, vector<32x128xbf16>, vector<8x128xf32> -> vector<8x128xf32>
    %192 = arith.addf %189, %191 : vector<8x128xf32>
    %193 = arith.negf %192 : vector<8x128xf32>
    %194 = math.exp %193 : vector<8x128xf32>
    %cst_70 = arith.constant 1.000000e+00 : f32
    %195 = vector.broadcast %cst_70 : f32 to vector<8x128xf32>
    %196 = arith.addf %195, %194 : vector<8x128xf32>
    %197 = arith.divf %195, %196 : vector<8x128xf32>
    %198 = math.tanh %192 : vector<8x128xf32>
    %199 = vector.extract_strided_slice %197 {offsets = [0, 0], sizes = [8, 32], strides = [1, 1]} : vector<8x128xf32> to vector<8x32xf32>
    %200 = vector.extract_strided_slice %197 {offsets = [0, 32], sizes = [8, 32], strides = [1, 1]} : vector<8x128xf32> to vector<8x32xf32>
    %201 = vector.extract_strided_slice %198 {offsets = [0, 64], sizes = [8, 32], strides = [1, 1]} : vector<8x128xf32> to vector<8x32xf32>
    %202 = vector.extract_strided_slice %197 {offsets = [0, 96], sizes = [8, 32], strides = [1, 1]} : vector<8x128xf32> to vector<8x32xf32>
    %203 = arith.mulf %200, %183 : vector<8x32xf32>
    %204 = arith.mulf %199, %201 : vector<8x32xf32>
    %205 = arith.addf %203, %204 : vector<8x32xf32>
    %206 = math.tanh %205 : vector<8x32xf32>
    %207 = arith.mulf %202, %206 : vector<8x32xf32>
    %c3_71 = arith.constant 3 : index
    %c0_72 = arith.constant 0 : index
    %c0_73 = arith.constant 0 : index
    %208 = vector.load %arg19[%c3_71, %c0_72, %c0_73] : memref<4x8x32xf32, #tpu.memory_space<vmem>>, vector<1x8x32xf32>
    %209 = vector.shape_cast %208 : vector<1x8x32xf32> to vector<8x32xf32>
    %210 = vector.shape_cast %207 : vector<8x32xf32> to vector<1x8x32xf32>
    tpu.vector_store %arg19[%c3_71, %c0_72, %c0_73], %210 {strides = array<i32>} : memref<4x8x32xf32, #tpu.memory_space<vmem>>, vector<1x8x32xf32>,
    %c1_74 = arith.constant 1 : index
    %c0_75 = arith.constant 0 : index
    %c0_76 = arith.constant 0 : index
    %211 = vector.load %arg20[%c1_74, %c0_75, %c0_76] : memref<3x8x32xf32, #tpu.memory_space<vmem>>, vector<1x8x32xf32>
    %212 = vector.shape_cast %211 : vector<1x8x32xf32> to vector<8x32xf32>
    %213 = vector.shape_cast %207 : vector<8x32xf32> to vector<1x8x32xf32>
    tpu.vector_store %arg20[%c1_74, %c0_75, %c0_76], %213 {strides = array<i32>} : memref<3x8x32xf32, #tpu.memory_space<vmem>>, vector<1x8x32xf32>,
    %c1_77 = arith.constant 1 : index
    %c0_78 = arith.constant 0 : index
    %c0_79 = arith.constant 0 : index
    %214 = vector.load %arg21[%c1_77, %c0_78, %c0_79] : memref<3x8x32xf32, #tpu.memory_space<vmem>>, vector<1x8x32xf32>
    %215 = vector.shape_cast %214 : vector<1x8x32xf32> to vector<8x32xf32>
    %216 = vector.shape_cast %205 : vector<8x32xf32> to vector<1x8x32xf32>
    tpu.vector_store %arg21[%c1_77, %c0_78, %c0_79], %216 {strides = array<i32>} : memref<3x8x32xf32, #tpu.memory_space<vmem>>, vector<1x8x32xf32>,
    %c0_80 = arith.constant 0 : index
    %c0_81 = arith.constant 0 : index
    %c0_82 = arith.constant 0 : index
    %217 = vector.load %arg19[%c0_80, %c0_81, %c0_82] : memref<4x8x32xf32, #tpu.memory_space<vmem>>, vector<4x8x32xf32>
    %218 = vector.shape_cast %217 : vector<4x8x32xf32> to vector<32x32xf32>
    %219 = arith.truncf %218 : vector<32x32xf32> to vector<32x32xbf16>
    %c0_83 = arith.constant 0 : index
    %c0_84 = arith.constant 0 : index
    %220 = vector.load %arg9[%c0_83, %c0_84] : memref<32x128xbf16, #tpu.memory_space<vmem>>, vector<32x128xbf16>
    %cst_85 = arith.constant dense<0.000000e+00> : vector<32x128xf32>
    %221 = tpu.matmul %219, %220, %cst_85 {dimension_numbers = #tpu.dot_dimension_numbers<[1], [0], [0], [1], [0, 0, 1, 1], [], []>} : vector<32x32xbf16>, vector<32x128xbf16>, vector<32x128xf32> -> vector<32x128xf32>
    %c0_86 = arith.constant 0 : index
    %c0_87 = arith.constant 0 : index
    %222 = vector.load %arg11[%c0_86, %c0_87] : memref<1x128xf32, #tpu.memory_space<vmem>>, vector<1x128xf32>
    %223 = vector.broadcast %222 : vector<1x128xf32> to vector<32x128xf32>
    %224 = arith.addf %221, %223 : vector<32x128xf32>
    %c0_88 = arith.constant 0 : index
    %c0_89 = arith.constant 0 : index
    %225 = vector.load %arg10[%c0_88, %c0_89] : memref<32x128xbf16, #tpu.memory_space<vmem>>, vector<32x128xbf16>
    %c2_90 = arith.constant 2 : index
    %c0_91 = arith.constant 0 : index
    %c0_92 = arith.constant 0 : index
    %226 = vector.load %arg20[%c2_90, %c0_91, %c0_92] : memref<3x8x32xf32, #tpu.memory_space<vmem>>, vector<1x8x32xf32>
    %227 = vector.shape_cast %226 : vector<1x8x32xf32> to vector<8x32xf32>
    %c2_93 = arith.constant 2 : index
    %c0_94 = arith.constant 0 : index
    %c0_95 = arith.constant 0 : index
    %228 = vector.load %arg21[%c2_93, %c0_94, %c0_95] : memref<3x8x32xf32, #tpu.memory_space<vmem>>, vector<1x8x32xf32>
    %229 = vector.shape_cast %228 : vector<1x8x32xf32> to vector<8x32xf32>
    %230 = vector.extract_strided_slice %224 {offsets = [0, 0], sizes = [8, 128], strides = [1, 1]} : vector<32x128xf32> to vector<8x128xf32>
    %231 = arith.truncf %227 : vector<8x32xf32> to vector<8x32xbf16>
    %cst_96 = arith.constant dense<0.000000e+00> : vector<8x128xf32>
    %232 = tpu.matmul %231, %225, %cst_96 {dimension_numbers = #tpu.dot_dimension_numbers<[1], [0], [0], [1], [0, 0, 1, 1], [], []>} : vector<8x32xbf16>, vector<32x128xbf16>, vector<8x128xf32> -> vector<8x128xf32>
    %233 = arith.addf %230, %232 : vector<8x128xf32>
    %234 = arith.negf %233 : vector<8x128xf32>
    %235 = math.exp %234 : vector<8x128xf32>
    %cst_97 = arith.constant 1.000000e+00 : f32
    %236 = vector.broadcast %cst_97 : f32 to vector<8x128xf32>
    %237 = arith.addf %236, %235 : vector<8x128xf32>
    %238 = arith.divf %236, %237 : vector<8x128xf32>
    %239 = math.tanh %233 : vector<8x128xf32>
    %240 = vector.extract_strided_slice %238 {offsets = [0, 0], sizes = [8, 32], strides = [1, 1]} : vector<8x128xf32> to vector<8x32xf32>
    %241 = vector.extract_strided_slice %238 {offsets = [0, 32], sizes = [8, 32], strides = [1, 1]} : vector<8x128xf32> to vector<8x32xf32>
    %242 = vector.extract_strided_slice %239 {offsets = [0, 64], sizes = [8, 32], strides = [1, 1]} : vector<8x128xf32> to vector<8x32xf32>
    %243 = vector.extract_strided_slice %238 {offsets = [0, 96], sizes = [8, 32], strides = [1, 1]} : vector<8x128xf32> to vector<8x32xf32>
    %244 = arith.mulf %241, %229 : vector<8x32xf32>
    %245 = arith.mulf %240, %242 : vector<8x32xf32>
    %246 = arith.addf %244, %245 : vector<8x32xf32>
    %247 = math.tanh %246 : vector<8x32xf32>
    %248 = arith.mulf %243, %247 : vector<8x32xf32>
    %c0_98 = arith.constant 0 : index
    %c0_99 = arith.constant 0 : index
    %c0_100 = arith.constant 0 : index
    %249 = vector.load %arg18[%c0_98, %c0_99, %c0_100] : memref<4x8x32xf32, #tpu.memory_space<vmem>>, vector<1x8x32xf32>
    %250 = vector.shape_cast %249 : vector<1x8x32xf32> to vector<8x32xf32>
    %251 = vector.shape_cast %248 : vector<8x32xf32> to vector<1x8x32xf32>
    tpu.vector_store %arg18[%c0_98, %c0_99, %c0_100], %251 {strides = array<i32>} : memref<4x8x32xf32, #tpu.memory_space<vmem>>, vector<1x8x32xf32>,
    %252 = vector.extract_strided_slice %224 {offsets = [8, 0], sizes = [8, 128], strides = [1, 1]} : vector<32x128xf32> to vector<8x128xf32>
    %253 = arith.truncf %248 : vector<8x32xf32> to vector<8x32xbf16>
    %cst_101 = arith.constant dense<0.000000e+00> : vector<8x128xf32>
    %254 = tpu.matmul %253, %225, %cst_101 {dimension_numbers = #tpu.dot_dimension_numbers<[1], [0], [0], [1], [0, 0, 1, 1], [], []>} : vector<8x32xbf16>, vector<32x128xbf16>, vector<8x128xf32> -> vector<8x128xf32>
    %255 = arith.addf %252, %254 : vector<8x128xf32>
    %256 = arith.negf %255 : vector<8x128xf32>
    %257 = math.exp %256 : vector<8x128xf32>
    %cst_102 = arith.constant 1.000000e+00 : f32
    %258 = vector.broadcast %cst_102 : f32 to vector<8x128xf32>
    %259 = arith.addf %258, %257 : vector<8x128xf32>
    %260 = arith.divf %258, %259 : vector<8x128xf32>
    %261 = math.tanh %255 : vector<8x128xf32>
    %262 = vector.extract_strided_slice %260 {offsets = [0, 0], sizes = [8, 32], strides = [1, 1]} : vector<8x128xf32> to vector<8x32xf32>
    %263 = vector.extract_strided_slice %260 {offsets = [0, 32], sizes = [8, 32], strides = [1, 1]} : vector<8x128xf32> to vector<8x32xf32>
    %264 = vector.extract_strided_slice %261 {offsets = [0, 64], sizes = [8, 32], strides = [1, 1]} : vector<8x128xf32> to vector<8x32xf32>
    %265 = vector.extract_strided_slice %260 {offsets = [0, 96], sizes = [8, 32], strides = [1, 1]} : vector<8x128xf32> to vector<8x32xf32>
    %266 = arith.mulf %263, %246 : vector<8x32xf32>
    %267 = arith.mulf %262, %264 : vector<8x32xf32>
    %268 = arith.addf %266, %267 : vector<8x32xf32>
    %269 = math.tanh %268 : vector<8x32xf32>
    %270 = arith.mulf %265, %269 : vector<8x32xf32>
    %c1_103 = arith.constant 1 : index
    %c0_104 = arith.constant 0 : index
    %c0_105 = arith.constant 0 : index
    %271 = vector.load %arg18[%c1_103, %c0_104, %c0_105] : memref<4x8x32xf32, #tpu.memory_space<vmem>>, vector<1x8x32xf32>
    %272 = vector.shape_cast %271 : vector<1x8x32xf32> to vector<8x32xf32>
    %273 = vector.shape_cast %270 : vector<8x32xf32> to vector<1x8x32xf32>
    tpu.vector_store %arg18[%c1_103, %c0_104, %c0_105], %273 {strides = array<i32>} : memref<4x8x32xf32, #tpu.memory_space<vmem>>, vector<1x8x32xf32>,
    %274 = vector.extract_strided_slice %224 {offsets = [16, 0], sizes = [8, 128], strides = [1, 1]} : vector<32x128xf32> to vector<8x128xf32>
    %275 = arith.truncf %270 : vector<8x32xf32> to vector<8x32xbf16>
    %cst_106 = arith.constant dense<0.000000e+00> : vector<8x128xf32>
    %276 = tpu.matmul %275, %225, %cst_106 {dimension_numbers = #tpu.dot_dimension_numbers<[1], [0], [0], [1], [0, 0, 1, 1], [], []>} : vector<8x32xbf16>, vector<32x128xbf16>, vector<8x128xf32> -> vector<8x128xf32>
    %277 = arith.addf %274, %276 : vector<8x128xf32>
    %278 = arith.negf %277 : vector<8x128xf32>
    %279 = math.exp %278 : vector<8x128xf32>
    %cst_107 = arith.constant 1.000000e+00 : f32
    %280 = vector.broadcast %cst_107 : f32 to vector<8x128xf32>
    %281 = arith.addf %280, %279 : vector<8x128xf32>
    %282 = arith.divf %280, %281 : vector<8x128xf32>
    %283 = math.tanh %277 : vector<8x128xf32>
    %284 = vector.extract_strided_slice %282 {offsets = [0, 0], sizes = [8, 32], strides = [1, 1]} : vector<8x128xf32> to vector<8x32xf32>
    %285 = vector.extract_strided_slice %282 {offsets = [0, 32], sizes = [8, 32], strides = [1, 1]} : vector<8x128xf32> to vector<8x32xf32>
    %286 = vector.extract_strided_slice %283 {offsets = [0, 64], sizes = [8, 32], strides = [1, 1]} : vector<8x128xf32> to vector<8x32xf32>
    %287 = vector.extract_strided_slice %282 {offsets = [0, 96], sizes = [8, 32], strides = [1, 1]} : vector<8x128xf32> to vector<8x32xf32>
    %288 = arith.mulf %285, %268 : vector<8x32xf32>
    %289 = arith.mulf %284, %286 : vector<8x32xf32>
    %290 = arith.addf %288, %289 : vector<8x32xf32>
    %291 = math.tanh %290 : vector<8x32xf32>
    %292 = arith.mulf %287, %291 : vector<8x32xf32>
    %c2_108 = arith.constant 2 : index
    %c0_109 = arith.constant 0 : index
    %c0_110 = arith.constant 0 : index
    %293 = vector.load %arg18[%c2_108, %c0_109, %c0_110] : memref<4x8x32xf32, #tpu.memory_space<vmem>>, vector<1x8x32xf32>
    %294 = vector.shape_cast %293 : vector<1x8x32xf32> to vector<8x32xf32>
    %295 = vector.shape_cast %292 : vector<8x32xf32> to vector<1x8x32xf32>
    tpu.vector_store %arg18[%c2_108, %c0_109, %c0_110], %295 {strides = array<i32>} : memref<4x8x32xf32, #tpu.memory_space<vmem>>, vector<1x8x32xf32>,
    %296 = vector.extract_strided_slice %224 {offsets = [24, 0], sizes = [8, 128], strides = [1, 1]} : vector<32x128xf32> to vector<8x128xf32>
    %297 = arith.truncf %292 : vector<8x32xf32> to vector<8x32xbf16>
    %cst_111 = arith.constant dense<0.000000e+00> : vector<8x128xf32>
    %298 = tpu.matmul %297, %225, %cst_111 {dimension_numbers = #tpu.dot_dimension_numbers<[1], [0], [0], [1], [0, 0, 1, 1], [], []>} : vector<8x32xbf16>, vector<32x128xbf16>, vector<8x128xf32> -> vector<8x128xf32>
    %299 = arith.addf %296, %298 : vector<8x128xf32>
    %300 = arith.negf %299 : vector<8x128xf32>
    %301 = math.exp %300 : vector<8x128xf32>
    %cst_112 = arith.constant 1.000000e+00 : f32
    %302 = vector.broadcast %cst_112 : f32 to vector<8x128xf32>
    %303 = arith.addf %302, %301 : vector<8x128xf32>
    %304 = arith.divf %302, %303 : vector<8x128xf32>
    %305 = math.tanh %299 : vector<8x128xf32>
    %306 = vector.extract_strided_slice %304 {offsets = [0, 0], sizes = [8, 32], strides = [1, 1]} : vector<8x128xf32> to vector<8x32xf32>
    %307 = vector.extract_strided_slice %304 {offsets = [0, 32], sizes = [8, 32], strides = [1, 1]} : vector<8x128xf32> to vector<8x32xf32>
    %308 = vector.extract_strided_slice %305 {offsets = [0, 64], sizes = [8, 32], strides = [1, 1]} : vector<8x128xf32> to vector<8x32xf32>
    %309 = vector.extract_strided_slice %304 {offsets = [0, 96], sizes = [8, 32], strides = [1, 1]} : vector<8x128xf32> to vector<8x32xf32>
    %310 = arith.mulf %307, %290 : vector<8x32xf32>
    %311 = arith.mulf %306, %308 : vector<8x32xf32>
    %312 = arith.addf %310, %311 : vector<8x32xf32>
    %313 = math.tanh %312 : vector<8x32xf32>
    %314 = arith.mulf %309, %313 : vector<8x32xf32>
    %c3_113 = arith.constant 3 : index
    %c0_114 = arith.constant 0 : index
    %c0_115 = arith.constant 0 : index
    %315 = vector.load %arg18[%c3_113, %c0_114, %c0_115] : memref<4x8x32xf32, #tpu.memory_space<vmem>>, vector<1x8x32xf32>
    %316 = vector.shape_cast %315 : vector<1x8x32xf32> to vector<8x32xf32>
    %317 = vector.shape_cast %314 : vector<8x32xf32> to vector<1x8x32xf32>
    tpu.vector_store %arg18[%c3_113, %c0_114, %c0_115], %317 {strides = array<i32>} : memref<4x8x32xf32, #tpu.memory_space<vmem>>, vector<1x8x32xf32>,
    %c2_116 = arith.constant 2 : index
    %c0_117 = arith.constant 0 : index
    %c0_118 = arith.constant 0 : index
    %318 = vector.load %arg20[%c2_116, %c0_117, %c0_118] : memref<3x8x32xf32, #tpu.memory_space<vmem>>, vector<1x8x32xf32>
    %319 = vector.shape_cast %318 : vector<1x8x32xf32> to vector<8x32xf32>
    %320 = vector.shape_cast %314 : vector<8x32xf32> to vector<1x8x32xf32>
    tpu.vector_store %arg20[%c2_116, %c0_117, %c0_118], %320 {strides = array<i32>} : memref<3x8x32xf32, #tpu.memory_space<vmem>>, vector<1x8x32xf32>,
    %c2_119 = arith.constant 2 : index
    %c0_120 = arith.constant 0 : index
    %c0_121 = arith.constant 0 : index
    %321 = vector.load %arg21[%c2_119, %c0_120, %c0_121] : memref<3x8x32xf32, #tpu.memory_space<vmem>>, vector<1x8x32xf32>
    %322 = vector.shape_cast %321 : vector<1x8x32xf32> to vector<8x32xf32>
    %323 = vector.shape_cast %312 : vector<8x32xf32> to vector<1x8x32xf32>
    tpu.vector_store %arg21[%c2_119, %c0_120, %c0_121], %323 {strides = array<i32>} : memref<3x8x32xf32, #tpu.memory_space<vmem>>, vector<1x8x32xf32>,
    %c0_122 = arith.constant 0 : index
    %c0_123 = arith.constant 0 : index
    %c0_124 = arith.constant 0 : index
    %324 = vector.load %arg18[%c0_122, %c0_123, %c0_124] : memref<4x8x32xf32, #tpu.memory_space<vmem>>, vector<4x8x32xf32>
    %325 = vector.shape_cast %324 : vector<4x8x32xf32> to vector<32x32xf32>
    %326 = arith.truncf %325 : vector<32x32xf32> to vector<32x32xbf16>
    %c0_125 = arith.constant 0 : index
    %c0_126 = arith.constant 0 : index
    %327 = vector.load %arg12[%c0_125, %c0_126] : memref<32x16xbf16, #tpu.memory_space<vmem>>, vector<32x16xbf16>
    %cst_127 = arith.constant dense<0.000000e+00> : vector<32x16xf32>
    %328 = tpu.matmul %326, %327, %cst_127 {dimension_numbers = #tpu.dot_dimension_numbers<[1], [0], [0], [1], [0, 0, 1, 1], [], []>} : vector<32x32xbf16>, vector<32x16xbf16>, vector<32x16xf32> -> vector<32x16xf32>
    %c0_128 = arith.constant 0 : index
    %c0_129 = arith.constant 0 : index
    %329 = vector.load %arg13[%c0_128, %c0_129] : memref<1x16xf32, #tpu.memory_space<vmem>>, vector<1x16xf32>
    %330 = vector.broadcast %329 : vector<1x16xf32> to vector<32x16xf32>
    %331 = arith.addf %328, %330 : vector<32x16xf32>
    %cst_130 = arith.constant 0.000000e+00 : f32
    %332 = vector.broadcast %cst_130 : f32 to vector<32x16xf32>
    %333 = arith.maximumf %331, %332 : vector<32x16xf32>
    %334 = arith.truncf %333 : vector<32x16xf32> to vector<32x16xbf16>
    %c0_131 = arith.constant 0 : index
    %c0_132 = arith.constant 0 : index
    %335 = vector.load %arg14[%c0_131, %c0_132] : memref<16x128xbf16, #tpu.memory_space<vmem>>, vector<16x128xbf16>
    %cst_133 = arith.constant dense<0.000000e+00> : vector<32x128xf32>
    %336 = tpu.matmul %334, %335, %cst_133 {dimension_numbers = #tpu.dot_dimension_numbers<[1], [0], [0], [1], [0, 0, 1, 1], [], []>} : vector<32x16xbf16>, vector<16x128xbf16>, vector<32x128xf32> -> vector<32x128xf32>
    %c0_134 = arith.constant 0 : index
    %c0_135 = arith.constant 0 : index
    %337 = vector.load %arg15[%c0_134, %c0_135] : memref<1x128xf32, #tpu.memory_space<vmem>>, vector<1x128xf32>
    %338 = vector.broadcast %337 : vector<1x128xf32> to vector<32x128xf32>
    %339 = arith.addf %336, %338 : vector<32x128xf32>
    %340 = vector.shape_cast %339 : vector<32x128xf32> to vector<4x8x128xf32>
    %c0_136 = arith.constant 0 : index
    %c0_137 = arith.constant 0 : index
    %c0_138 = arith.constant 0 : index
    %341 = vector.load %arg16[%c0_136, %c0_137, %c0_138] : memref<4x8x128xf32, #tpu.memory_space<vmem>>, vector<4x8x128xf32>
    tpu.vector_store %arg16[%c0_136, %c0_137, %c0_138], %340 {strides = array<i32>} : memref<4x8x128xf32, #tpu.memory_space<vmem>>, vector<4x8x128xf32>,
    return
  }
  func.func @transform_0(%arg0: i32, %arg1: i32) -> (i32, i32, i32) {
    %c0_i32 = arith.constant 0 : i32
    %c0_i32_0 = arith.constant 0 : i32
    return %arg1, %arg0, %c0_i32 : i32, i32, i32
  }
  func.func @transform_1(%arg0: i32, %arg1: i32) -> (i32, i32) {
    %c0_i32 = arith.constant 0 : i32
    %c0_i32_0 = arith.constant 0 : i32
    %c0_i32_1 = arith.constant 0 : i32
    return %c0_i32, %c0_i32_0 : i32, i32
  }
  func.func @transform_2(%arg0: i32, %arg1: i32) -> (i32, i32) {
    %c0_i32 = arith.constant 0 : i32
    %c0_i32_0 = arith.constant 0 : i32
    %c0_i32_1 = arith.constant 0 : i32
    return %c0_i32, %c0_i32_0 : i32, i32
  }
  func.func @transform_3(%arg0: i32, %arg1: i32) -> (i32, i32) {
    %c0_i32 = arith.constant 0 : i32
    %c0_i32_0 = arith.constant 0 : i32
    %c0_i32_1 = arith.constant 0 : i32
    return %c0_i32, %c0_i32_0 : i32, i32
  }
  func.func @transform_4(%arg0: i32, %arg1: i32) -> (i32, i32) {
    %c0_i32 = arith.constant 0 : i32
    %c0_i32_0 = arith.constant 0 : i32
    %c0_i32_1 = arith.constant 0 : i32
    return %c0_i32, %c0_i32_0 : i32, i32
  }
  func.func @transform_5(%arg0: i32, %arg1: i32) -> (i32, i32) {
    %c0_i32 = arith.constant 0 : i32
    %c0_i32_0 = arith.constant 0 : i32
    %c0_i32_1 = arith.constant 0 : i32
    return %c0_i32, %c0_i32_0 : i32, i32
  }
  func.func @transform_6(%arg0: i32, %arg1: i32) -> (i32, i32) {
    %c0_i32 = arith.constant 0 : i32
    %c0_i32_0 = arith.constant 0 : i32
    %c0_i32_1 = arith.constant 0 : i32
    return %c0_i32, %c0_i32_0 : i32, i32
  }
  func.func @transform_7(%arg0: i32, %arg1: i32) -> (i32, i32) {
    %c0_i32 = arith.constant 0 : i32
    %c0_i32_0 = arith.constant 0 : i32
    %c0_i32_1 = arith.constant 0 : i32
    return %c0_i32, %c0_i32_0 : i32, i32
  }
  func.func @transform_8(%arg0: i32, %arg1: i32) -> (i32, i32) {
    %c0_i32 = arith.constant 0 : i32
    %c0_i32_0 = arith.constant 0 : i32
    %c0_i32_1 = arith.constant 0 : i32
    return %c0_i32, %c0_i32_0 : i32, i32
  }
  func.func @transform_9(%arg0: i32, %arg1: i32) -> (i32, i32) {
    %c0_i32 = arith.constant 0 : i32
    %c0_i32_0 = arith.constant 0 : i32
    %c0_i32_1 = arith.constant 0 : i32
    return %c0_i32, %c0_i32_0 : i32, i32
  }
  func.func @transform_10(%arg0: i32, %arg1: i32) -> (i32, i32) {
    %c0_i32 = arith.constant 0 : i32
    %c0_i32_0 = arith.constant 0 : i32
    %c0_i32_1 = arith.constant 0 : i32
    return %c0_i32, %c0_i32_0 : i32, i32
  }
  func.func @transform_11(%arg0: i32, %arg1: i32) -> (i32, i32) {
    %c0_i32 = arith.constant 0 : i32
    %c0_i32_0 = arith.constant 0 : i32
    %c0_i32_1 = arith.constant 0 : i32
    return %c0_i32, %c0_i32_0 : i32, i32
  }
  func.func @transform_12(%arg0: i32, %arg1: i32) -> (i32, i32) {
    %c0_i32 = arith.constant 0 : i32
    %c0_i32_0 = arith.constant 0 : i32
    %c0_i32_1 = arith.constant 0 : i32
    return %c0_i32, %c0_i32_0 : i32, i32
  }
  func.func @transform_13(%arg0: i32, %arg1: i32) -> (i32, i32) {
    %c0_i32 = arith.constant 0 : i32
    %c0_i32_0 = arith.constant 0 : i32
    %c0_i32_1 = arith.constant 0 : i32
    return %c0_i32, %c0_i32_0 : i32, i32
  }
  func.func @transform_14(%arg0: i32, %arg1: i32) -> (i32, i32, i32) {
    %c0_i32 = arith.constant 0 : i32
    %c0_i32_0 = arith.constant 0 : i32
    return %arg1, %arg0, %c0_i32 : i32, i32, i32
  }
}

</mosaic_0001>

<llo_original>
// kernel: imu_generator_forward.1
$region0: #{imu_generator_forward.1}
  #allocation0 [shape = 'u32[]', space=smem, size = 0x4, offset = 0x4, fixed_abs, tag = 'smem constant byte address 0x4 - core index']
  #allocation1 [shape = 'u32[72,128]{1,0:T(1,128)}', space=vmem, size = 0x9000, scoped, tag = 'internal scratch']
  #allocation2 [shape = 'f32[4,8,128]{2,1,0:T(8,128)}', space=vmem, size = 0x4000, scoped, tag = 'scratch operand']
  #allocation3 [shape = 'f32[4,8,32]{2,1,0:T(8,128)}', space=vmem, size = 0x4000, scoped, tag = 'scratch operand']
  #allocation4 [shape = 'f32[4,8,32]{2,1,0:T(8,128)}', space=vmem, size = 0x4000, scoped, tag = 'scratch operand']
  #allocation5 [shape = 'f32[3,8,32]{2,1,0:T(8,128)}', space=vmem, size = 0x3000, scoped, tag = 'scratch operand']
  #allocation6 [shape = 'f32[3,8,32]{2,1,0:T(8,128)}', space=vmem, size = 0x3000, scoped, tag = 'scratch operand']
  %s0 = inlined_call_operand.vmem [shape: f32[8,8,13], index: 0, kind: input, shape index: {}]
  %s1 = inlined_call_operand.vmem [shape: bf16[13,128], index: 1, kind: input, shape index: {}]
  %s2 = inlined_call_operand.vmem [shape: bf16[32,128], index: 2, kind: input, shape index: {}]
  %s3 = inlined_call_operand.vmem [shape: f32[1,128], index: 3, kind: input, shape index: {}]
  %s4 = inlined_call_operand.vmem [shape: bf16[32,128], index: 4, kind: input, shape index: {}]
  %s5 = inlined_call_operand.vmem [shape: bf16[32,128], index: 5, kind: input, shape index: {}]
  %s6 = inlined_call_operand.vmem [shape: f32[1,128], index: 6, kind: input, shape index: {}]
  %s7 = inlined_call_operand.vmem [shape: bf16[32,128], index: 7, kind: input, shape index: {}]
  %s8 = inlined_call_operand.vmem [shape: bf16[32,128], index: 8, kind: input, shape index: {}]
  %s9 = inlined_call_operand.vmem [shape: f32[1,128], index: 9, kind: input, shape index: {}]
  %s10 = inlined_call_operand.vmem [shape: bf16[32,16], index: 10, kind: input, shape index: {}]
  %s11 = inlined_call_operand.vmem [shape: f32[1,16], index: 11, kind: input, shape index: {}]
  %s12 = inlined_call_operand.vmem [shape: bf16[16,128], index: 12, kind: input, shape index: {}]
  %s13 = inlined_call_operand.vmem [shape: f32[1,128], index: 13, kind: input, shape index: {}]
  %s14 = inlined_call_operand.vmem [shape: f32[8,8,128], index: 14, kind: output, shape index: {}]
  %s15 = sld [smem:[#allocation0]]
  $region93: #{imu_generator_forward.1} parent=0
    _
  %s17 = ssub.s32 1, %s15
  %s18 = scalar_select 0, %s17, %s15
  loop: start=0, step=1, limit=4
  $region2: #{imu_generator_forward.1} parent=0 // loop_pre_header
    _
  $region3: #{imu_generator_forward.1} parent=0 // loop_header
    %s20 = sphi 0, %s24
    %p21 = scmp.ge.s32.totalorder %s20, 4
    %s27 = sphi 0, %s39
    %s28 = sphi 0, %s35
    %s29 = sphi 0, %s27
    %s30 = sphi 0, %s28
    %s31 = sphi 0, %s29
    %s32 = sphi 0, %s30
    %s44 = sphi 0, %s46
    %s47 = sphi 0, %s44
    %s48 = sphi 0, %s47
    %s64 = sphi 0, %s48
    %s68 = sphi 0, %s68
    %s70 = sphi 0, %s68
    %s71 = sphi 0, %s70
    %s85 = sphi 0, %s71
    %s89 = sphi 0, %s89
    %s91 = sphi 0, %s89
    %s92 = sphi 0, %s91
    %s106 = sphi 0, %s92
    %s110 = sphi 0, %s110
    %s112 = sphi 0, %s110
    %s113 = sphi 0, %s112
    %s127 = sphi 0, %s113
    %s131 = sphi 0, %s131
    %s133 = sphi 0, %s131
    %s134 = sphi 0, %s133
    %s148 = sphi 0, %s134
    %s152 = sphi 0, %s152
    %s154 = sphi 0, %s152
    %s155 = sphi 0, %s154
    %s169 = sphi 0, %s155
    %s173 = sphi 0, %s173
    %s175 = sphi 0, %s173
    %s176 = sphi 0, %s175
    %s190 = sphi 0, %s176
    %s194 = sphi 0, %s194
    %s196 = sphi 0, %s194
    %s197 = sphi 0, %s196
    %s211 = sphi 0, %s197
    %s215 = sphi 0, %s215
    %s217 = sphi 0, %s215
    %s218 = sphi 0, %s217
    %s232 = sphi 0, %s218
    %s236 = sphi 0, %s236
    %s238 = sphi 0, %s236
    %s239 = sphi 0, %s238
    %s253 = sphi 0, %s239
    %s257 = sphi 0, %s257
    %s259 = sphi 0, %s257
    %s260 = sphi 0, %s259
    %s274 = sphi 0, %s260
    %s278 = sphi 0, %s278
    %s280 = sphi 0, %s278
    %s281 = sphi 0, %s280
    %s295 = sphi 0, %s281
    %s299 = sphi 0, %s299
    %s301 = sphi 0, %s299
    %s302 = sphi 0, %s301
    %s316 = sphi 0, %s302
    %s320 = sphi 0, %s320
    %s322 = sphi 0, %s320
    %s323 = sphi 0, %s322
    %s337 = sphi 0, %s323
    %s345 = sphi 0, %s347
    %s348 = sphi 0, %s345
    %s349 = sphi 0, %s348
    %s365 = sphi 0, %s349
  $region4: #{imu_generator_forward.1} parent=0 // loop_header_branch
    %23 = sbr.rel (%p21) target = $region8
  $region5: #{imu_generator_forward.1} parent=0 // loop_body
    %s25 = ssub.s32 %s20, 1
    %s26 = ssub.s32 %s20, 2
    %s33 = sadd.s32 1, %s28
    %p34 = scmp.ge.s32.totalorder %s33, 2
    %s35 = scalar_select %p34, 0, %s33
    %s36 = sadd.s32 1, %s27
    %s37 = scalar_select %p34, %s36, %s27
    %p38 = scmp.ge.s32.totalorder %s37, 1
    %s39 = scalar_select %p38, 0, %s37
    %s40 = ssub.s32 %s28, %s35
    %s41 = ssub.s32 %s27, %s39
    %s42 = sor.u32 %s40, %s41
    %p43 = scmp.eq.s32.totalorder %s42, 0
    %s45 = sadd.s32 %s44, 1
    %s46 = scalar_select %p43, %s44, %s45
    %p49 = pneg %p43
    %p50 = scmp.eq.s32.totalorder %s20, 1
    %p51 = por %p49, %p50
    %p52 = scmp.ne.s32.totalorder %s44, %s47
    %p53 = scmp.eq.s32.totalorder %s20, 0
    %p54 = por %p52, %p53
    %p55 = scmp.ne.s32.totalorder %s44, %s47
    %p56 = scmp.eq.s32.totalorder %s25, 1
    %p57 = por %p55, %p56
    %p58 = scmp.ne.s32.totalorder %s47, %s48
    %p59 = scmp.eq.s32.totalorder %s25, 0
    %p60 = por %p58, %p59
    %p61 = scmp.ne.s32.totalorder %s47, %s48
    %p62 = scmp.eq.s32.totalorder %s26, 1
    %p63 = por %p61, %p62
    %p65 = scmp.ne.s32.totalorder %s48, %s64
    %p66 = scmp.eq.s32.totalorder %s26, 0
    %p67 = por %p65, %p66
    %s69 = sadd.s32 %s68, 1
    %p72 = scmp.eq.s32.totalorder %s20, 1
    %p73 = scmp.ne.s32.totalorder %s68, %s70
    %p74 = scmp.eq.s32.totalorder %s20, 0
    %p75 = por %p73, %p74
    %p76 = scmp.ne.s32.totalorder %s68, %s70
    %p77 = scmp.eq.s32.totalorder %s25, 1
    %p78 = por %p76, %p77
    %p79 = scmp.ne.s32.totalorder %s70, %s71
    %p80 = scmp.eq.s32.totalorder %s25, 0
    %p81 = por %p79, %p80
    %p82 = scmp.ne.s32.totalorder %s70, %s71
    %p83 = scmp.eq.s32.totalorder %s26, 1
    %p84 = por %p82, %p83
    %p86 = scmp.ne.s32.totalorder %s71, %s85
    %p87 = scmp.eq.s32.totalorder %s26, 0
    %p88 = por %p86, %p87
    %s90 = sadd.s32 %s89, 1
    %p93 = scmp.eq.s32.totalorder %s20, 1
    %p94 = scmp.ne.s32.totalorder %s89, %s91
    %p95 = scmp.eq.s32.totalorder %s20, 0
    %p96 = por %p94, %p95
    %p97 = scmp.ne.s32.totalorder %s89, %s91
    %p98 = scmp.eq.s32.totalorder %s25, 1
    %p99 = por %p97, %p98
    %p100 = scmp.ne.s32.totalorder %s91, %s92
    %p101 = scmp.eq.s32.totalorder %s25, 0
    %p102 = por %p100, %p101
    %p103 = scmp.ne.s32.totalorder %s91, %s92
    %p104 = scmp.eq.s32.totalorder %s26, 1
    %p105 = por %p103, %p104
    %p107 = scmp.ne.s32.totalorder %s92, %s106
    %p108 = scmp.eq.s32.totalorder %s26, 0
    %p109 = por %p107, %p108
    %s111 = sadd.s32 %s110, 1
    %p114 = scmp.eq.s32.totalorder %s20, 1
    %p115 = scmp.ne.s32.totalorder %s110, %s112
    %p116 = scmp.eq.s32.totalorder %s20, 0
    %p117 = por %p115, %p116
    %p118 = scmp.ne.s32.totalorder %s110, %s112
    %p119 = scmp.eq.s32.totalorder %s25, 1
    %p120 = por %p118, %p119
    %p121 = scmp.ne.s32.totalorder %s112, %s113
    %p122 = scmp.eq.s32.totalorder %s25, 0
    %p123 = por %p121, %p122
    %p124 = scmp.ne.s32.totalorder %s112, %s113
    %p125 = scmp.eq.s32.totalorder %s26, 1
    %p126 = por %p124, %p125
    %p128 = scmp.ne.s32.totalorder %s113, %s127
    %p129 = scmp.eq.s32.totalorder %s26, 0
    %p130 = por %p128, %p129
    %s132 = sadd.s32 %s131, 1
    %p135 = scmp.eq.s32.totalorder %s20, 1
    %p136 = scmp.ne.s32.totalorder %s131, %s133
    %p137 = scmp.eq.s32.totalorder %s20, 0
    %p138 = por %p136, %p137
    %p139 = scmp.ne.s32.totalorder %s131, %s133
    %p140 = scmp.eq.s32.totalorder %s25, 1
    %p141 = por %p139, %p140
    %p142 = scmp.ne.s32.totalorder %s133, %s134
    %p143 = scmp.eq.s32.totalorder %s25, 0
    %p144 = por %p142, %p143
    %p145 = scmp.ne.s32.totalorder %s133, %s134
    %p146 = scmp.eq.s32.totalorder %s26, 1
    %p147 = por %p145, %p146
    %p149 = scmp.ne.s32.totalorder %s134, %s148
    %p150 = scmp.eq.s32.totalorder %s26, 0
    %p151 = por %p149, %p150
    %s153 = sadd.s32 %s152, 1
    %p156 = scmp.eq.s32.totalorder %s20, 1
    %p157 = scmp.ne.s32.totalorder %s152, %s154
    %p158 = scmp.eq.s32.totalorder %s20, 0
    %p159 = por %p157, %p158
    %p160 = scmp.ne.s32.totalorder %s152, %s154
    %p161 = scmp.eq.s32.totalorder %s25, 1
    %p162 = por %p160, %p161
    %p163 = scmp.ne.s32.totalorder %s154, %s155
    %p164 = scmp.eq.s32.totalorder %s25, 0
    %p165 = por %p163, %p164
    %p166 = scmp.ne.s32.totalorder %s154, %s155
    %p167 = scmp.eq.s32.totalorder %s26, 1
    %p168 = por %p166, %p167
    %p170 = scmp.ne.s32.totalorder %s155, %s169
    %p171 = scmp.eq.s32.totalorder %s26, 0
    %p172 = por %p170, %p171
    %s174 = sadd.s32 %s173, 1
    %p177 = scmp.eq.s32.totalorder %s20, 1
    %p178 = scmp.ne.s32.totalorder %s173, %s175
    %p179 = scmp.eq.s32.totalorder %s20, 0
    %p180 = por %p178, %p179
    %p181 = scmp.ne.s32.totalorder %s173, %s175
    %p182 = scmp.eq.s32.totalorder %s25, 1
    %p183 = por %p181, %p182
    %p184 = scmp.ne.s32.totalorder %s175, %s176
    %p185 = scmp.eq.s32.totalorder %s25, 0
    %p186 = por %p184, %p185
    %p187 = scmp.ne.s32.totalorder %s175, %s176
    %p188 = scmp.eq.s32.totalorder %s26, 1
    %p189 = por %p187, %p188
    %p191 = scmp.ne.s32.totalorder %s176, %s190
    %p192 = scmp.eq.s32.totalorder %s26, 0
    %p193 = por %p191, %p192
    %s195 = sadd.s32 %s194, 1
    %p198 = scmp.eq.s32.totalorder %s20, 1
    %p199 = scmp.ne.s32.totalorder %s194, %s196
    %p200 = scmp.eq.s32.totalorder %s20, 0
    %p201 = por %p199, %p200
    %p202 = scmp.ne.s32.totalorder %s194, %s196
    %p203 = scmp.eq.s32.totalorder %s25, 1
    %p204 = por %p202, %p203
    %p205 = scmp.ne.s32.totalorder %s196, %s197
    %p206 = scmp.eq.s32.totalorder %s25, 0
    %p207 = por %p205, %p206
    %p208 = scmp.ne.s32.totalorder %s196, %s197
    %p209 = scmp.eq.s32.totalorder %s26, 1
    %p210 = por %p208, %p209
    %p212 = scmp.ne.s32.totalorder %s197, %s211
    %p213 = scmp.eq.s32.totalorder %s26, 0
    %p214 = por %p212, %p213
    %s216 = sadd.s32 %s215, 1
    %p219 = scmp.eq.s32.totalorder %s20, 1
    %p220 = scmp.ne.s32.totalorder %s215, %s217
    %p221 = scmp.eq.s32.totalorder %s20, 0
    %p222 = por %p220, %p221
    %p223 = scmp.ne.s32.totalorder %s215, %s217
    %p224 = scmp.eq.s32.totalorder %s25, 1
    %p225 = por %p223, %p224
    %p226 = scmp.ne.s32.totalorder %s217, %s218
    %p227 = scmp.eq.s32.totalorder %s25, 0
    %p228 = por %p226, %p227
    %p229 = scmp.ne.s32.totalorder %s217, %s218
    %p230 = scmp.eq.s32.totalorder %s26, 1
    %p231 = por %p229, %p230
    %p233 = scmp.ne.s32.totalorder %s218, %s232
    %p234 = scmp.eq.s32.totalorder %s26, 0
    %p235 = por %p233, %p234
    %s237 = sadd.s32 %s236, 1
    %p240 = scmp.eq.s32.totalorder %s20, 1
    %p241 = scmp.ne.s32.totalorder %s236, %s238
    %p242 = scmp.eq.s32.totalorder %s20, 0
    %p243 = por %p241, %p242
    %p244 = scmp.ne.s32.totalorder %s236, %s238
    %p245 = scmp.eq.s32.totalorder %s25, 1
    %p246 = por %p244, %p245
    %p247 = scmp.ne.s32.totalorder %s238, %s239
    %p248 = scmp.eq.s32.totalorder %s25, 0
    %p249 = por %p247, %p248
    %p250 = scmp.ne.s32.totalorder %s238, %s239
    %p251 = scmp.eq.s32.totalorder %s26, 1
    %p252 = por %p250, %p251
    %p254 = scmp.ne.s32.totalorder %s239, %s253
    %p255 = scmp.eq.s32.totalorder %s26, 0
    %p256 = por %p254, %p255
    %s258 = sadd.s32 %s257, 1
    %p261 = scmp.eq.s32.totalorder %s20, 1
    %p262 = scmp.ne.s32.totalorder %s257, %s259
    %p263 = scmp.eq.s32.totalorder %s20, 0
    %p264 = por %p262, %p263
    %p265 = scmp.ne.s32.totalorder %s257, %s259
    %p266 = scmp.eq.s32.totalorder %s25, 1
    %p267 = por %p265, %p266
    %p268 = scmp.ne.s32.totalorder %s259, %s260
    %p269 = scmp.eq.s32.totalorder %s25, 0
    %p270 = por %p268, %p269
    %p271 = scmp.ne.s32.totalorder %s259, %s260
    %p272 = scmp.eq.s32.totalorder %s26, 1
    %p273 = por %p271, %p272
    %p275 = scmp.ne.s32.totalorder %s260, %s274
    %p276 = scmp.eq.s32.totalorder %s26, 0
    %p277 = por %p275, %p276
    %s279 = sadd.s32 %s278, 1
    %p282 = scmp.eq.s32.totalorder %s20, 1
    %p283 = scmp.ne.s32.totalorder %s278, %s280
    %p284 = scmp.eq.s32.totalorder %s20, 0
    %p285 = por %p283, %p284
    %p286 = scmp.ne.s32.totalorder %s278, %s280
    %p287 = scmp.eq.s32.totalorder %s25, 1
    %p288 = por %p286, %p287
    %p289 = scmp.ne.s32.totalorder %s280, %s281
    %p290 = scmp.eq.s32.totalorder %s25, 0
    %p291 = por %p289, %p290
    %p292 = scmp.ne.s32.totalorder %s280, %s281
    %p293 = scmp.eq.s32.totalorder %s26, 1
    %p294 = por %p292, %p293
    %p296 = scmp.ne.s32.totalorder %s281, %s295
    %p297 = scmp.eq.s32.totalorder %s26, 0
    %p298 = por %p296, %p297
    %s300 = sadd.s32 %s299, 1
    %p303 = scmp.eq.s32.totalorder %s20, 1
    %p304 = scmp.ne.s32.totalorder %s299, %s301
    %p305 = scmp.eq.s32.totalorder %s20, 0
    %p306 = por %p304, %p305
    %p307 = scmp.ne.s32.totalorder %s299, %s301
    %p308 = scmp.eq.s32.totalorder %s25, 1
    %p309 = por %p307, %p308
    %p310 = scmp.ne.s32.totalorder %s301, %s302
    %p311 = scmp.eq.s32.totalorder %s25, 0
    %p312 = por %p310, %p311
    %p313 = scmp.ne.s32.totalorder %s301, %s302
    %p314 = scmp.eq.s32.totalorder %s26, 1
    %p315 = por %p313, %p314
    %p317 = scmp.ne.s32.totalorder %s302, %s316
    %p318 = scmp.eq.s32.totalorder %s26, 0
    %p319 = por %p317, %p318
    %s321 = sadd.s32 %s320, 1
    %p324 = scmp.eq.s32.totalorder %s20, 1
    %p325 = scmp.ne.s32.totalorder %s320, %s322
    %p326 = scmp.eq.s32.totalorder %s20, 0
    %p327 = por %p325, %p326
    %p328 = scmp.ne.s32.totalorder %s320, %s322
    %p329 = scmp.eq.s32.totalorder %s25, 1
    %p330 = por %p328, %p329
    %p331 = scmp.ne.s32.totalorder %s322, %s323
    %p332 = scmp.eq.s32.totalorder %s25, 0
    %p333 = por %p331, %p332
    %p334 = scmp.ne.s32.totalorder %s322, %s323
    %p335 = scmp.eq.s32.totalorder %s26, 1
    %p336 = por %p334, %p335
    %p338 = scmp.ne.s32.totalorder %s323, %s337
    %p339 = scmp.eq.s32.totalorder %s26, 0
    %p340 = por %p338, %p339
    %s341 = ssub.s32 %s28, %s35
    %s342 = ssub.s32 %s27, %s39
    %s343 = sor.u32 %s341, %s342
    %p344 = scmp.eq.s32.totalorder %s343, 0
    %s346 = sadd.s32 %s345, 1
    %s347 = scalar_select %p344, %s345, %s346
    %p350 = pneg %p344
    %p351 = scmp.eq.s32.totalorder %s20, 1
    %p352 = por %p350, %p351
    %p353 = scmp.ne.s32.totalorder %s345, %s348
    %p354 = scmp.eq.s32.totalorder %s20, 0
    %p355 = por %p353, %p354
    %p356 = scmp.ne.s32.totalorder %s345, %s348
    %p357 = scmp.eq.s32.totalorder %s25, 1
    %p358 = por %p356, %p357
    %p359 = scmp.ne.s32.totalorder %s348, %s349
    %p360 = scmp.eq.s32.totalorder %s25, 0
    %p361 = por %p359, %p360
    %p362 = scmp.ne.s32.totalorder %s348, %s349
    %p363 = scmp.eq.s32.totalorder %s26, 1
    %p364 = por %p362, %p363
    %p366 = scmp.ne.s32.totalorder %s349, %s365
    %p367 = scmp.eq.s32.totalorder %s26, 0
    %p368 = por %p366, %p367
    %p369 = scmp.le.s32.totalorder 1, %s20
    %p370 = scmp.lt.s32.totalorder %s20, 3
    %p371 = pnand %p369, %p370
    %p372 = pneg %p371
    // Predicated region
    $region9: #{imu_generator_forward.1} parent=5 // pred_check
      _
    $region10: #{imu_generator_forward.1} parent=5 // pred_check_branch
      %374 = sbr.rel (%p371) target = $region12
    $region11: #{imu_generator_forward.1} parent=5 // pred_region
      %s375 = ssub.s32 %s20, 1
      // Predicated region
      $region13: #{imu_generator_forward.1} parent=11 // pred_check
        %p376 = pneg %p81
      $region14: #{imu_generator_forward.1} parent=11 // pred_check_branch
        %378 = sbr.rel (%p376) target = $region16
      $region15: #{imu_generator_forward.1} parent=11 // pred_region
        _
      $region16: #{imu_generator_forward.1} parent=11 // pred_fallthru
        _
      // Predicated region
      $region17: #{imu_generator_forward.1} parent=11 // pred_check
        %p379 = pneg %p102
      $region18: #{imu_generator_forward.1} parent=11 // pred_check_branch
        %381 = sbr.rel (%p379) target = $region20
      $region19: #{imu_generator_forward.1} parent=11 // pred_region
        _
      $region20: #{imu_generator_forward.1} parent=11 // pred_fallthru
        _
      // Predicated region
      $region21: #{imu_generator_forward.1} parent=11 // pred_check
        %p382 = pneg %p123
      $region22: #{imu_generator_forward.1} parent=11 // pred_check_branch
        %384 = sbr.rel (%p382) target = $region24
      $region23: #{imu_generator_forward.1} parent=11 // pred_region
        _
      $region24: #{imu_generator_forward.1} parent=11 // pred_fallthru
        _
      // Predicated region
      $region25: #{imu_generator_forward.1} parent=11 // pred_check
        %p385 = pneg %p144
      $region26: #{imu_generator_forward.1} parent=11 // pred_check_branch
        %387 = sbr.rel (%p385) target = $region28
      $region27: #{imu_generator_forward.1} parent=11 // pred_region
        _
      $region28: #{imu_generator_forward.1} parent=11 // pred_fallthru
        _
      // Predicated region
      $region29: #{imu_generator_forward.1} parent=11 // pred_check
        %p388 = pneg %p165
      $region30: #{imu_generator_forward.1} parent=11 // pred_check_branch
        %390 = sbr.rel (%p388) target = $region32
      $region31: #{imu_generator_forward.1} parent=11 // pred_region
        _
      $region32: #{imu_generator_forward.1} parent=11 // pred_fallthru
        _
      // Predicated region
      $region33: #{imu_generator_forward.1} parent=11 // pred_check
        %p391 = pneg %p186
      $region34: #{imu_generator_forward.1} parent=11 // pred_check_branch
        %393 = sbr.rel (%p391) target = $region36
      $region35: #{imu_generator_forward.1} parent=11 // pred_region
        _
      $region36: #{imu_generator_forward.1} parent=11 // pred_fallthru
        _
      // Predicated region
      $region37: #{imu_generator_forward.1} parent=11 // pred_check
        %p394 = pneg %p207
      $region38: #{imu_generator_forward.1} parent=11 // pred_check_branch
        %396 = sbr.rel (%p394) target = $region40
      $region39: #{imu_generator_forward.1} parent=11 // pred_region
        _
      $region40: #{imu_generator_forward.1} parent=11 // pred_fallthru
        _
      // Predicated region
      $region41: #{imu_generator_forward.1} parent=11 // pred_check
        %p397 = pneg %p228
      $region42: #{imu_generator_forward.1} parent=11 // pred_check_branch
        %399 = sbr.rel (%p397) target = $region44
      $region43: #{imu_generator_forward.1} parent=11 // pred_region
        _
      $region44: #{imu_generator_forward.1} parent=11 // pred_fallthru
        _
      // Predicated region
      $region45: #{imu_generator_forward.1} parent=11 // pred_check
        %p400 = pneg %p249
      $region46: #{imu_generator_forward.1} parent=11 // pred_check_branch
        %402 = sbr.rel (%p400) target = $region48
      $region47: #{imu_generator_forward.1} parent=11 // pred_region
        _
      $region48: #{imu_generator_forward.1} parent=11 // pred_fallthru
        _
      // Predicated region
      $region49: #{imu_generator_forward.1} parent=11 // pred_check
        %p403 = pneg %p270
      $region50: #{imu_generator_forward.1} parent=11 // pred_check_branch
        %405 = sbr.rel (%p403) target = $region52
      $region51: #{imu_generator_forward.1} parent=11 // pred_region
        _
      $region52: #{imu_generator_forward.1} parent=11 // pred_fallthru
        _
      // Predicated region
      $region53: #{imu_generator_forward.1} parent=11 // pred_check
        %p406 = pneg %p291
      $region54: #{imu_generator_forward.1} parent=11 // pred_check_branch
        %408 = sbr.rel (%p406) target = $region56
      $region55: #{imu_generator_forward.1} parent=11 // pred_region
        _
      $region56: #{imu_generator_forward.1} parent=11 // pred_fallthru
        _
      // Predicated region
      $region57: #{imu_generator_forward.1} parent=11 // pred_check
        %p409 = pneg %p312
      $region58: #{imu_generator_forward.1} parent=11 // pred_check_branch
        %411 = sbr.rel (%p409) target = $region60
      $region59: #{imu_generator_forward.1} parent=11 // pred_region
        _
      $region60: #{imu_generator_forward.1} parent=11 // pred_fallthru
        _
      // Predicated region
      $region61: #{imu_generator_forward.1} parent=11 // pred_check
        %p412 = pneg %p333
      $region62: #{imu_generator_forward.1} parent=11 // pred_check_branch
        %414 = sbr.rel (%p412) target = $region64
      $region63: #{imu_generator_forward.1} parent=11 // pred_region
        _
      $region64: #{imu_generator_forward.1} parent=11 // pred_fallthru
        _
    $region12: #{imu_generator_forward.1} parent=5 // pred_fallthru
      _
    %p415 = scmp.lt.s32.totalorder %s20, 2
    // Predicated region
    $region65: #{imu_generator_forward.1} parent=5 // pred_check
      %p416 = pneg %p415
    $region66: #{imu_generator_forward.1} parent=5 // pred_check_branch
      %418 = sbr.rel (%p416) target = $region68
    $region67: #{imu_generator_forward.1} parent=5 // pred_region
      // Predicated region
      $region69: #{imu_generator_forward.1} parent=67 // pred_check
        %p419 = pneg %p54
      $region70: #{imu_generator_forward.1} parent=67 // pred_check_branch
        %421 = sbr.rel (%p419) target = $region72
      $region71: #{imu_generator_forward.1} parent=67 // pred_region
        %s422 = smul.u32 4, %s28
        %p423 = scmp.lt.s32.totalorder %s422, 7
        %s424 = scalar_select %p423, %s422, 7
        %p425 = scmp.lt.s32.totalorder %s27, 0
        %s426 = scalar_select %p425, %s27, 0
        %s427 = sadd.s32 %s426, %s424
        %s428 = smul.addr %s427, 8
        %s429 = scalar_lea.vmem %s0, %s428
        %s430 = smul.u32 4, %s28
      $region72: #{imu_generator_forward.1} parent=67 // pred_fallthru
        _
    $region68: #{imu_generator_forward.1} parent=5 // pred_fallthru
      _
    %p431 = scmp.le.s32.totalorder 1, %s20
    %p432 = scmp.lt.s32.totalorder %s20, 3
    %p433 = pnand %p431, %p432
    %p434 = pneg %p433
    // Predicated region
    $region73: #{imu_generator_forward.1} parent=5 // pred_check
      _
    $region74: #{imu_generator_forward.1} parent=5 // pred_check_branch
      %436 = sbr.rel (%p433) target = $region76
    $region75: #{imu_generator_forward.1} parent=5 // pred_region
      %s437 = ssub.s32 %s20, 1
      %s438 = smul.u32 4, %s30
      %p439 = scmp.lt.s32.totalorder %s438, 7
      %s440 = scalar_select %p439, %s438, 7
      %p441 = scmp.lt.s32.totalorder %s29, 0
      %s442 = scalar_select %p441, %s29, 0
      %s443 = sadd.s32 %s442, %s440
      %s444 = smul.addr %s443, 8
      %s445 = scalar_lea.vmem %s0, %s444
      %p446 = pneg %p60
      %p447 = pneg %p57
      %p448 = pneg %p81
      %p449 = pneg %p78
      %p450 = pneg %p102
      %p451 = pneg %p99
      %p452 = pneg %p123
      %p453 = pneg %p120
      %p454 = pneg %p144
      %p455 = pneg %p141
      %p456 = pneg %p165
      %p457 = pneg %p162
      %p458 = pneg %p186
      %p459 = pneg %p183
      %p460 = pneg %p207
      %p461 = pneg %p204
      %p462 = pneg %p228
      %p463 = pneg %p225
      %p464 = pneg %p249
      %p465 = pneg %p246
      %p466 = pneg %p270
      %p467 = pneg %p267
      %p468 = pneg %p291
      %p469 = pneg %p288
      %p470 = pneg %p312
      %p471 = pneg %p309
      %p472 = pneg %p333
      %p473 = pneg %p330
      %p474 = pneg %p361
      %p475 = pneg %p358
      %s476 = smul.u32 4, %s30
      %p477 = scmp.lt.s32.totalorder %s476, 7
      %s478 = scalar_select %p477, %s476, 7
      %p479 = scmp.lt.s32.totalorder %s29, 0
      %s480 = scalar_select %p479, %s29, 0
      %s481 = sadd.s32 %s480, %s478
      %s482 = smul.addr %s481, 8
      %s483 = scalar_lea.vmem %s14, %s482
      %s484 = smul.u32 4, %s30
      %p485 = scmp.lt.s32.totalorder %s484, 7
      %s486 = scalar_select %p485, %s484, 7
      %p487 = scmp.lt.s32.totalorder %s29, 0
      %s488 = scalar_select %p487, %s29, 0
      %s489 = sadd.s32 %s488, %s486
      %s490 = smul.addr %s489, 8
      %s491 = scalar_lea.vmem %s0, %s490
      %s492 = smul.u32 4, %s30
      %s493 = smul.u32 4, %s30
      %p494 = scmp.lt.s32.totalorder %s493, 7
      %s495 = scalar_select %p494, %s493, 7
      %p496 = scmp.lt.s32.totalorder %s29, 0
      %s497 = scalar_select %p496, %s29, 0
      %s498 = sadd.s32 %s497, %s495
      %s499 = smul.addr %s498, 8
      %s500 = scalar_lea.vmem %s14, %s499
      %s501 = smul.u32 4, %s30
      %p503 = scmp.eq.s32.totalorder %s30, 0
      // Predicated region
      $region77: #{imu_generator_forward.1} parent=75 // pred_check
        %p504 = pneg %p503
      $region78: #{imu_generator_forward.1} parent=75 // pred_check_branch
        %506 = sbr.rel (%p504) target = $region80
      $region79: #{imu_generator_forward.1} parent=75 // pred_region
        %vm507 = vcmask 261120
        %508 = vst.msk [vmem:[#allocation5] sm:$0xff] %vm507, 0.0
        %509 = vst.msk [vmem:[#allocation5 + $0x8] sm:$0xff] %vm507, 0.0
        %510 = vst.msk [vmem:[#allocation5 + $0x10] sm:$0xff] %vm507, 0.0
        %511 = vst.msk [vmem:[#allocation6] sm:$0xff] %vm507, 0.0
        %512 = vst.msk [vmem:[#allocation6 + $0x8] sm:$0xff] %vm507, 0.0
        %513 = vst.msk [vmem:[#allocation6 + $0x10] sm:$0xff] %vm507, 0.0
      $region80: #{imu_generator_forward.1} parent=75 // pred_fallthru
        _
      %v514 = vld [vmem:[%s491] sm:$0xff]
      %v515 = vld [vmem:[%s491 + $0x8] sm:$0xff]
      %v516 = vld [vmem:[%s491 + $0x10] sm:$0xff]
      %v517 = vld [vmem:[%s491 + $0x18] sm:$0xff]
      %v518 = vpack.c.bf16 %v515, %v514
      %v519 = vpack.c.bf16 %v517, %v516
      %v520 = vld [vmem:[%s1] sm:$0xf]
      %v521 = vld [vmem:[%s1 + $0x4] sm:$0x7]
      %v522 = vld [vmem:[%s3] sm:$0x1]
      %v524 = vperm.slane %v522, 0
      %v528 = vunpack.c.l.b16 %v520
      %v529 = vunpack.c.l.b16 %v521
      %v530 = vpack.c.b16 %v529, %v528
      %vm531 = vcmask 105472
      %v533 = vsel %vm531, %v518, 0
      %v536 = vsel %vm531, %v519, 0
      %vm538 = vcmask 1045504
      %vm539 = vcmask 1046528
      %v540 = vsel %vm538, 4294967295, 65535
      %v541 = vsel %vm539, %v540, 0
      %v543 = vand.u32 %v530, %v541
      %545 = vmatpush.bf16.msra.mxu0 0
      %546 = vmatpush.bf16.msra.mxu0 0
      %547 = vmatpush.bf16.msra.mxu0 0
      %548 = vmatpush.bf16.msra.mxu0 0
      %549 = vmatpush.bf16.msra.mxu0 0
      %550 = vmatpush.bf16.msra.mxu0 0
      %551 = vmatpush.bf16.msra.mxu0 0
      %552 = vmatpush.bf16.msra.mxu0 %v543
      %553 = vmatmul.bf16.gmra.mxu0 %v533
      %v554 = vpop.f32.mrf.mxu0
      %v555 = vadd.f32 %v524, %v554
      %v556 = vpop.f32.mrf.mxu0
      %v557 = vadd.f32 %v524, %v556
      %558 = vmatmul.bf16.gmra.mxu0 %v536
      %v559 = vpop.f32.mrf.mxu0
      %v560 = vadd.f32 %v524, %v559
      %v561 = vpop.f32.mrf.mxu0
      %v562 = vadd.f32 %v524, %v561
      %563 = vdwg.mxu0
      %v564 = vld [vmem:[%s2] sm:$0xf]
      %v565 = vld [vmem:[%s2 + $0x4] sm:$0xf]
      %v566 = vld [vmem:[%s2 + $0x8] sm:$0xf]
      %v567 = vld [vmem:[%s2 + $0xc] sm:$0xf]
      %v568 = vld [vmem:[#allocation5] sm:$0xff]
      %v569 = vld [vmem:[#allocation6] sm:$0xff]
      %v570 = vpack.c.bf16 %v568, %v568
      %v575 = vunpack.c.l.b16 %v564
      %v576 = vunpack.c.l.b16 %v565
      %v577 = vunpack.c.l.b16 %v566
      %v578 = vunpack.c.l.b16 %v567
      %v579 = vpack.c.b16 %v576, %v575
      %v580 = vpack.c.b16 %v578, %v577
      %vm583 = vcmask 261120
      %v585 = vsel %vm583, %v570, 0
      %587 = vmatpush.bf16.msra.mxu0 0
      %588 = vmatpush.bf16.msra.mxu0 0
      %589 = vmatpush.bf16.msra.mxu0 0
      %590 = vmatpush.bf16.msra.mxu0 0
      %591 = vmatpush.bf16.msra.mxu0 0
      %592 = vmatpush.bf16.msra.mxu0 0
      %593 = vmatpush.bf16.msra.mxu0 %v580
      %594 = vmatpush.bf16.msra.mxu0 %v579
      %595 = vmatmul.bf16.gmra.mxu0 %v585
      %v596 = vpop.f32.mrf.mxu0
      %v597 = vadd.f32 0.0, %v596
      %v598 = vpop.f32.mrf.mxu0
      %599 = vdwg.mxu0
      %v600 = vadd.f32 %v555, %v597
      %v601 = vxor.u32 %v600, 2147483648
      %v602 = vmul.f32 %v601, 1.442695
      %v603 = vpow.pop %v602
      %v604 = vadd.f32 %v603, 1.0
      %v605 = vrcp.pop %v604
      %v606 = vmul.f32 %v604, %v605
      %v607 = vsub.f32 1.0, %v606
      %v608 = vmul.f32 %v605, %v607
      %v609 = vadd.f32 %v605, %v608
      %vm610 = vweird.f32 %v604
      %vm611 = vweird.f32 %v605
      %vm612 = vmor %vm610, %vm611
      %v613 = vsel %vm612, %v605, %v609
      %v614 = vand.u32 2147483647, %v604
      %vm615 = vcmp.eq.f32.partialorder %v614, 8.507059e+37
      %v616 = vand.u32 %v604, 2147483648
      %v617 = vor.u32 1.1754944e-38, %v616
      %v618 = vsel %vm615, %v617, %v613
      %v619 = vmul.f32 1.0, %v618
      %v620 = vtanh.pop %v600
      %622 = vrot.lane.b32.xlu0 %v569, 32
      %v623 = vpop.permute.xlu0 %622
      %v625 = vmul.f32 %v619, %v623
      %627 = vrot.lane.b32.xlu0 %v620, 64
      %v628 = vpop.permute.xlu0 %627
      %v630 = vmul.f32 %v619, %v628
      %632 = vrot.lane.b32.xlu0 %v630, 32
      %v633 = vpop.permute.xlu0 %632
      %v635 = vadd.f32 %v625, %v633
      %v636 = vtanh.pop %v635
      %638 = vrot.lane.b32.xlu0 %v636, 64
      %v639 = vpop.permute.xlu0 %638
      %v641 = vmul.f32 %v619, %v639
      %643 = vrot.lane.b32.xlu0 %v641, 32
      %v644 = vpop.permute.xlu0 %643
      %646 = vst.msk [vmem:[#allocation3] sm:$0xff] %vm583, %v644
      %v647 = vpack.c.bf16 %v641, %v641
      %649 = vrot.lane.b32.xlu0 %v647, 32
      %v650 = vpop.permute.xlu0 %649
      %v652 = vsel %vm583, %v650, 0
      %654 = vmatpush.bf16.msra.mxu0 0
      %655 = vmatpush.bf16.msra.mxu0 0
      %656 = vmatpush.bf16.msra.mxu0 0
      %657 = vmatpush.bf16.msra.mxu0 0
      %658 = vmatpush.bf16.msra.mxu0 0
      %659 = vmatpush.bf16.msra.mxu0 0
      %660 = vmatpush.bf16.msra.mxu0 %v580
      %661 = vmatpush.bf16.msra.mxu0 %v579
      %662 = vmatmul.bf16.gmra.mxu0 %v652
      %v663 = vpop.f32.mrf.mxu0
      %v664 = vadd.f32 0.0, %v663
      %v665 = vpop.f32.mrf.mxu0
      %666 = vdwg.mxu0
      %v667 = vadd.f32 %v557, %v664
      %v668 = vxor.u32 %v667, 2147483648
      %v669 = vmul.f32 %v668, 1.442695
      %v670 = vpow.pop %v669
      %v671 = vadd.f32 %v670, 1.0
      %v672 = vrcp.pop %v671
      %v673 = vmul.f32 %v671, %v672
      %v674 = vsub.f32 1.0, %v673
      %v675 = vmul.f32 %v672, %v674
      %v676 = vadd.f32 %v672, %v675
      %vm677 = vweird.f32 %v671
      %vm678 = vweird.f32 %v672
      %vm679 = vmor %vm677, %vm678
      %v680 = vsel %vm679, %v672, %v676
      %v681 = vand.u32 2147483647, %v671
      %vm682 = vcmp.eq.f32.partialorder %v681, 8.507059e+37
      %v683 = vand.u32 %v671, 2147483648
      %v684 = vor.u32 1.1754944e-38, %v683
      %v685 = vsel %vm682, %v684, %v680
      %v686 = vmul.f32 1.0, %v685
      %v687 = vtanh.pop %v667
      %v688 = vmul.f32 %v686, %v635
      %690 = vrot.lane.b32.xlu0 %v687, 64
      %v691 = vpop.permute.xlu0 %690
      %v693 = vmul.f32 %v686, %v691
      %695 = vrot.lane.b32.xlu0 %v693, 32
      %v696 = vpop.permute.xlu0 %695
      %v698 = vadd.f32 %v688, %v696
      %v699 = vtanh.pop %v698
      %701 = vrot.lane.b32.xlu0 %v699, 64
      %v702 = vpop.permute.xlu0 %701
      %v704 = vmul.f32 %v686, %v702
      %706 = vrot.lane.b32.xlu0 %v704, 32
      %v707 = vpop.permute.xlu0 %706
      %s709 = scalar_lea.vmem [#allocation3], 8
      %710 = vst.msk [vmem:[%s709] sm:$0xff] %vm583, %v707
      %v711 = vpack.c.bf16 %v704, %v704
      %713 = vrot.lane.b32.xlu0 %v711, 32
      %v714 = vpop.permute.xlu0 %713
      %v716 = vsel %vm583, %v714, 0
      %718 = vmatpush.bf16.msra.mxu0 0
      %719 = vmatpush.bf16.msra.mxu0 0
      %720 = vmatpush.bf16.msra.mxu0 0
      %721 = vmatpush.bf16.msra.mxu0 0
      %722 = vmatpush.bf16.msra.mxu0 0
      %723 = vmatpush.bf16.msra.mxu0 0
      %724 = vmatpush.bf16.msra.mxu0 %v580
      %725 = vmatpush.bf16.msra.mxu0 %v579
      %726 = vmatmul.bf16.gmra.mxu0 %v716
      %v727 = vpop.f32.mrf.mxu0
      %v728 = vadd.f32 0.0, %v727
      %v729 = vpop.f32.mrf.mxu0
      %730 = vdwg.mxu0
      %v731 = vadd.f32 %v560, %v728
      %v732 = vxor.u32 %v731, 2147483648
      %v733 = vmul.f32 %v732, 1.442695
      %v734 = vpow.pop %v733
      %v735 = vadd.f32 %v734, 1.0
      %v736 = vrcp.pop %v735
      %v737 = vmul.f32 %v735, %v736
      %v738 = vsub.f32 1.0, %v737
      %v739 = vmul.f32 %v736, %v738
      %v740 = vadd.f32 %v736, %v739
      %vm741 = vweird.f32 %v735
      %vm742 = vweird.f32 %v736
      %vm743 = vmor %vm741, %vm742
      %v744 = vsel %vm743, %v736, %v740
      %v745 = vand.u32 2147483647, %v735
      %vm746 = vcmp.eq.f32.partialorder %v745, 8.507059e+37
      %v747 = vand.u32 %v735, 2147483648
      %v748 = vor.u32 1.1754944e-38, %v747
      %v749 = vsel %vm746, %v748, %v744
      %v750 = vmul.f32 1.0, %v749
      %v751 = vtanh.pop %v731
      %v752 = vmul.f32 %v750, %v698
      %754 = vrot.lane.b32.xlu0 %v751, 64
      %v755 = vpop.permute.xlu0 %754
      %v757 = vmul.f32 %v750, %v755
      %759 = vrot.lane.b32.xlu0 %v757, 32
      %v760 = vpop.permute.xlu0 %759
      %v762 = vadd.f32 %v752, %v760
      %v763 = vtanh.pop %v762
      %765 = vrot.lane.b32.xlu0 %v763, 64
      %v766 = vpop.permute.xlu0 %765
      %v768 = vmul.f32 %v750, %v766
      %770 = vrot.lane.b32.xlu0 %v768, 32
      %v771 = vpop.permute.xlu0 %770
      %s773 = scalar_lea.vmem [#allocation3], 16
      %774 = vst.msk [vmem:[%s773] sm:$0xff] %vm583, %v771
      %v775 = vpack.c.bf16 %v768, %v768
      %777 = vrot.lane.b32.xlu0 %v775, 32
      %v778 = vpop.permute.xlu0 %777
      %v780 = vsel %vm583, %v778, 0
      %782 = vmatpush.bf16.msra.mxu0 0
      %783 = vmatpush.bf16.msra.mxu0 0
      %784 = vmatpush.bf16.msra.mxu0 0
      %785 = vmatpush.bf16.msra.mxu0 0
      %786 = vmatpush.bf16.msra.mxu0 0
      %787 = vmatpush.bf16.msra.mxu0 0
      %788 = vmatpush.bf16.msra.mxu0 %v580
      %789 = vmatpush.bf16.msra.mxu0 %v579
      %790 = vmatmul.bf16.gmra.mxu0 %v780
      %v791 = vpop.f32.mrf.mxu0
      %v792 = vadd.f32 0.0, %v791
      %v793 = vpop.f32.mrf.mxu0
      %794 = vdwg.mxu0
      %v795 = vadd.f32 %v562, %v792
      %v796 = vxor.u32 %v795, 2147483648
      %v797 = vmul.f32 %v796, 1.442695
      %v798 = vpow.pop %v797
      %v799 = vadd.f32 %v798, 1.0
      %v800 = vrcp.pop %v799
      %v801 = vmul.f32 %v799, %v800
      %v802 = vsub.f32 1.0, %v801
      %v803 = vmul.f32 %v800, %v802
      %v804 = vadd.f32 %v800, %v803
      %vm805 = vweird.f32 %v799
      %vm806 = vweird.f32 %v800
      %vm807 = vmor %vm805, %vm806
      %v808 = vsel %vm807, %v800, %v804
      %v809 = vand.u32 2147483647, %v799
      %vm810 = vcmp.eq.f32.partialorder %v809, 8.507059e+37
      %v811 = vand.u32 %v799, 2147483648
      %v812 = vor.u32 1.1754944e-38, %v811
      %v813 = vsel %vm810, %v812, %v808
      %v814 = vmul.f32 1.0, %v813
      %v815 = vtanh.pop %v795
      %v816 = vmul.f32 %v814, %v762
      %818 = vrot.lane.b32.xlu0 %v815, 64
      %v819 = vpop.permute.xlu0 %818
      %v821 = vmul.f32 %v814, %v819
      %823 = vrot.lane.b32.xlu0 %v821, 32
      %v824 = vpop.permute.xlu0 %823
      %v826 = vadd.f32 %v816, %v824
      %v827 = vtanh.pop %v826
      %829 = vrot.lane.b32.xlu0 %v827, 64
      %v830 = vpop.permute.xlu0 %829
      %v832 = vmul.f32 %v814, %v830
      %834 = vrot.lane.b32.xlu0 %v832, 32
      %v835 = vpop.permute.xlu0 %834
      %s837 = scalar_lea.vmem [#allocation3], 24
      %838 = vst.msk [vmem:[%s837] sm:$0xff] %vm583, %v835
      %839 = vst.msk [vmem:[#allocation5] sm:$0xff] %vm583, %v835
      %841 = vrot.lane.b32.xlu0 %v826, 96
      %v842 = vpop.permute.xlu0 %841
      %844 = vst.msk [vmem:[#allocation6] sm:$0xff] %vm583, %v842
      %v845 = vld [vmem:[#allocation3] sm:$0xff]
      %v846 = vld [vmem:[#allocation3 + $0x8] sm:$0xff]
      %v847 = vld [vmem:[#allocation3 + $0x10] sm:$0xff]
      %v848 = vld [vmem:[#allocation3 + $0x18] sm:$0xff]
      %v849 = vpack.c.bf16 %v846, %v845
      %v850 = vpack.c.bf16 %v848, %v847
      %v851 = vld [vmem:[%s4] sm:$0xf]
      %v852 = vld [vmem:[%s4 + $0x4] sm:$0xf]
      %v853 = vld [vmem:[%s4 + $0x8] sm:$0xf]
      %v854 = vld [vmem:[%s4 + $0xc] sm:$0xf]
      %v855 = vld [vmem:[%s6] sm:$0x1]
      %v857 = vperm.slane %v855, 0
      %v863 = vunpack.c.l.b16 %v851
      %v864 = vunpack.c.l.b16 %v852
      %v865 = vunpack.c.l.b16 %v853
      %v866 = vunpack.c.l.b16 %v854
      %v867 = vpack.c.b16 %v864, %v863
      %v868 = vpack.c.b16 %v866, %v865
      %v872 = vsel %vm583, %v849, 0
      %v875 = vsel %vm583, %v850, 0
      %877 = vmatpush.bf16.msra.mxu0 0
      %878 = vmatpush.bf16.msra.mxu0 0
      %879 = vmatpush.bf16.msra.mxu0 0
      %880 = vmatpush.bf16.msra.mxu0 0
      %881 = vmatpush.bf16.msra.mxu0 0
      %882 = vmatpush.bf16.msra.mxu0 0
      %883 = vmatpush.bf16.msra.mxu0 %v868
      %884 = vmatpush.bf16.msra.mxu0 %v867
      %885 = vmatmul.bf16.gmra.mxu0 %v872
      %v886 = vpop.f32.mrf.mxu0
      %v887 = vadd.f32 %v857, %v886
      %v888 = vpop.f32.mrf.mxu0
      %v889 = vadd.f32 %v857, %v888
      %890 = vmatmul.bf16.gmra.mxu0 %v875
      %v891 = vpop.f32.mrf.mxu0
      %v892 = vadd.f32 %v857, %v891
      %v893 = vpop.f32.mrf.mxu0
      %v894 = vadd.f32 %v857, %v893
      %895 = vdwg.mxu0
      %v896 = vld [vmem:[%s5] sm:$0xf]
      %v897 = vld [vmem:[%s5 + $0x4] sm:$0xf]
      %v898 = vld [vmem:[%s5 + $0x8] sm:$0xf]
      %v899 = vld [vmem:[%s5 + $0xc] sm:$0xf]
      %s900 = scalar_lea.vmem [#allocation5], 8
      %v901 = vld [vmem:[%s900] sm:$0xff]
      %s902 = scalar_lea.vmem [#allocation6], 8
      %v903 = vld [vmem:[%s902] sm:$0xff]
      %v904 = vpack.c.bf16 %v901, %v901
      %v909 = vunpack.c.l.b16 %v896
      %v910 = vunpack.c.l.b16 %v897
      %v911 = vunpack.c.l.b16 %v898
      %v912 = vunpack.c.l.b16 %v899
      %v913 = vpack.c.b16 %v910, %v909
      %v914 = vpack.c.b16 %v912, %v911
      %v918 = vsel %vm583, %v904, 0
      %920 = vmatpush.bf16.msra.mxu0 0
      %921 = vmatpush.bf16.msra.mxu0 0
      %922 = vmatpush.bf16.msra.mxu0 0
      %923 = vmatpush.bf16.msra.mxu0 0
      %924 = vmatpush.bf16.msra.mxu0 0
      %925 = vmatpush.bf16.msra.mxu0 0
      %926 = vmatpush.bf16.msra.mxu0 %v914
      %927 = vmatpush.bf16.msra.mxu0 %v913
      %928 = vmatmul.bf16.gmra.mxu0 %v918
      %v929 = vpop.f32.mrf.mxu0
      %v930 = vadd.f32 0.0, %v929
      %v931 = vpop.f32.mrf.mxu0
      %932 = vdwg.mxu0
      %v933 = vadd.f32 %v887, %v930
      %v934 = vxor.u32 %v933, 2147483648
      %v935 = vmul.f32 %v934, 1.442695
      %v936 = vpow.pop %v935
      %v937 = vadd.f32 %v936, 1.0
      %v938 = vrcp.pop %v937
      %v939 = vmul.f32 %v937, %v938
      %v940 = vsub.f32 1.0, %v939
      %v941 = vmul.f32 %v938, %v940
      %v942 = vadd.f32 %v938, %v941
      %vm943 = vweird.f32 %v937
      %vm944 = vweird.f32 %v938
      %vm945 = vmor %vm943, %vm944
      %v946 = vsel %vm945, %v938, %v942
      %v947 = vand.u32 2147483647, %v937
      %vm948 = vcmp.eq.f32.partialorder %v947, 8.507059e+37
      %v949 = vand.u32 %v937, 2147483648
      %v950 = vor.u32 1.1754944e-38, %v949
      %v951 = vsel %vm948, %v950, %v946
      %v952 = vmul.f32 1.0, %v951
      %v953 = vtanh.pop %v933
      %955 = vrot.lane.b32.xlu0 %v903, 32
      %v956 = vpop.permute.xlu0 %955
      %v958 = vmul.f32 %v952, %v956
      %960 = vrot.lane.b32.xlu0 %v953, 64
      %v961 = vpop.permute.xlu0 %960
      %v963 = vmul.f32 %v952, %v961
      %965 = vrot.lane.b32.xlu0 %v963, 32
      %v966 = vpop.permute.xlu0 %965
      %v968 = vadd.f32 %v958, %v966
      %v969 = vtanh.pop %v968
      %971 = vrot.lane.b32.xlu0 %v969, 64
      %v972 = vpop.permute.xlu0 %971
      %v974 = vmul.f32 %v952, %v972
      %976 = vrot.lane.b32.xlu0 %v974, 32
      %v977 = vpop.permute.xlu0 %976
      %979 = vst.msk [vmem:[#allocation4] sm:$0xff] %vm583, %v977
      %v980 = vpack.c.bf16 %v974, %v974
      %982 = vrot.lane.b32.xlu0 %v980, 32
      %v983 = vpop.permute.xlu0 %982
      %v985 = vsel %vm583, %v983, 0
      %987 = vmatpush.bf16.msra.mxu0 0
      %988 = vmatpush.bf16.msra.mxu0 0
      %989 = vmatpush.bf16.msra.mxu0 0
      %990 = vmatpush.bf16.msra.mxu0 0
      %991 = vmatpush.bf16.msra.mxu0 0
      %992 = vmatpush.bf16.msra.mxu0 0
      %993 = vmatpush.bf16.msra.mxu0 %v914
      %994 = vmatpush.bf16.msra.mxu0 %v913
      %995 = vmatmul.bf16.gmra.mxu0 %v985
      %v996 = vpop.f32.mrf.mxu0
      %v997 = vadd.f32 0.0, %v996
      %v998 = vpop.f32.mrf.mxu0
      %999 = vdwg.mxu0
      %v1000 = vadd.f32 %v889, %v997
      %v1001 = vxor.u32 %v1000, 2147483648
      %v1002 = vmul.f32 %v1001, 1.442695
      %v1003 = vpow.pop %v1002
      %v1004 = vadd.f32 %v1003, 1.0
      %v1005 = vrcp.pop %v1004
      %v1006 = vmul.f32 %v1004, %v1005
      %v1007 = vsub.f32 1.0, %v1006
      %v1008 = vmul.f32 %v1005, %v1007
      %v1009 = vadd.f32 %v1005, %v1008
      %vm1010 = vweird.f32 %v1004
      %vm1011 = vweird.f32 %v1005
      %vm1012 = vmor %vm1010, %vm1011
      %v1013 = vsel %vm1012, %v1005, %v1009
      %v1014 = vand.u32 2147483647, %v1004
      %vm1015 = vcmp.eq.f32.partialorder %v1014, 8.507059e+37
      %v1016 = vand.u32 %v1004, 2147483648
      %v1017 = vor.u32 1.1754944e-38, %v1016
      %v1018 = vsel %vm1015, %v1017, %v1013
      %v1019 = vmul.f32 1.0, %v1018
      %v1020 = vtanh.pop %v1000
      %v1021 = vmul.f32 %v1019, %v968
      %1023 = vrot.lane.b32.xlu0 %v1020, 64
      %v1024 = vpop.permute.xlu0 %1023
      %v1026 = vmul.f32 %v1019, %v1024
      %1028 = vrot.lane.b32.xlu0 %v1026, 32
      %v1029 = vpop.permute.xlu0 %1028
      %v1031 = vadd.f32 %v1021, %v1029
      %v1032 = vtanh.pop %v1031
      %1034 = vrot.lane.b32.xlu0 %v1032, 64
      %v1035 = vpop.permute.xlu0 %1034
      %v1037 = vmul.f32 %v1019, %v1035
      %1039 = vrot.lane.b32.xlu0 %v1037, 32
      %v1040 = vpop.permute.xlu0 %1039
      %s1042 = scalar_lea.vmem [#allocation4], 8
      %1043 = vst.msk [vmem:[%s1042] sm:$0xff] %vm583, %v1040
      %v1044 = vpack.c.bf16 %v1037, %v1037
      %1046 = vrot.lane.b32.xlu0 %v1044, 32
      %v1047 = vpop.permute.xlu0 %1046
      %v1049 = vsel %vm583, %v1047, 0
      %1051 = vmatpush.bf16.msra.mxu0 0
      %1052 = vmatpush.bf16.msra.mxu0 0
      %1053 = vmatpush.bf16.msra.mxu0 0
      %1054 = vmatpush.bf16.msra.mxu0 0
      %1055 = vmatpush.bf16.msra.mxu0 0
      %1056 = vmatpush.bf16.msra.mxu0 0
      %1057 = vmatpush.bf16.msra.mxu0 %v914
      %1058 = vmatpush.bf16.msra.mxu0 %v913
      %1059 = vmatmul.bf16.gmra.mxu0 %v1049
      %v1060 = vpop.f32.mrf.mxu0
      %v1061 = vadd.f32 0.0, %v1060
      %v1062 = vpop.f32.mrf.mxu0
      %1063 = vdwg.mxu0
      %v1064 = vadd.f32 %v892, %v1061
      %v1065 = vxor.u32 %v1064, 2147483648
      %v1066 = vmul.f32 %v1065, 1.442695
      %v1067 = vpow.pop %v1066
      %v1068 = vadd.f32 %v1067, 1.0
      %v1069 = vrcp.pop %v1068
      %v1070 = vmul.f32 %v1068, %v1069
      %v1071 = vsub.f32 1.0, %v1070
      %v1072 = vmul.f32 %v1069, %v1071
      %v1073 = vadd.f32 %v1069, %v1072
      %vm1074 = vweird.f32 %v1068
      %vm1075 = vweird.f32 %v1069
      %vm1076 = vmor %vm1074, %vm1075
      %v1077 = vsel %vm1076, %v1069, %v1073
      %v1078 = vand.u32 2147483647, %v1068
      %vm1079 = vcmp.eq.f32.partialorder %v1078, 8.507059e+37
      %v1080 = vand.u32 %v1068, 2147483648
      %v1081 = vor.u32 1.1754944e-38, %v1080
      %v1082 = vsel %vm1079, %v1081, %v1077
      %v1083 = vmul.f32 1.0, %v1082
      %v1084 = vtanh.pop %v1064
      %v1085 = vmul.f32 %v1083, %v1031
      %1087 = vrot.lane.b32.xlu0 %v1084, 64
      %v1088 = vpop.permute.xlu0 %1087
      %v1090 = vmul.f32 %v1083, %v1088
      %1092 = vrot.lane.b32.xlu0 %v1090, 32
      %v1093 = vpop.permute.xlu0 %1092
      %v1095 = vadd.f32 %v1085, %v1093
      %v1096 = vtanh.pop %v1095
      %1098 = vrot.lane.b32.xlu0 %v1096, 64
      %v1099 = vpop.permute.xlu0 %1098
      %v1101 = vmul.f32 %v1083, %v1099
      %1103 = vrot.lane.b32.xlu0 %v1101, 32
      %v1104 = vpop.permute.xlu0 %1103
      %s1106 = scalar_lea.vmem [#allocation4], 16
      %1107 = vst.msk [vmem:[%s1106] sm:$0xff] %vm583, %v1104
      %v1108 = vpack.c.bf16 %v1101, %v1101
      %1110 = vrot.lane.b32.xlu0 %v1108, 32
      %v1111 = vpop.permute.xlu0 %1110
      %v1113 = vsel %vm583, %v1111, 0
      %1115 = vmatpush.bf16.msra.mxu0 0
      %1116 = vmatpush.bf16.msra.mxu0 0
      %1117 = vmatpush.bf16.msra.mxu0 0
      %1118 = vmatpush.bf16.msra.mxu0 0
      %1119 = vmatpush.bf16.msra.mxu0 0
      %1120 = vmatpush.bf16.msra.mxu0 0
      %1121 = vmatpush.bf16.msra.mxu0 %v914
      %1122 = vmatpush.bf16.msra.mxu0 %v913
      %1123 = vmatmul.bf16.gmra.mxu0 %v1113
      %v1124 = vpop.f32.mrf.mxu0
      %v1125 = vadd.f32 0.0, %v1124
      %v1126 = vpop.f32.mrf.mxu0
      %1127 = vdwg.mxu0
      %v1128 = vadd.f32 %v894, %v1125
      %v1129 = vxor.u32 %v1128, 2147483648
      %v1130 = vmul.f32 %v1129, 1.442695
      %v1131 = vpow.pop %v1130
      %v1132 = vadd.f32 %v1131, 1.0
      %v1133 = vrcp.pop %v1132
      %v1134 = vmul.f32 %v1132, %v1133
      %v1135 = vsub.f32 1.0, %v1134
      %v1136 = vmul.f32 %v1133, %v1135
      %v1137 = vadd.f32 %v1133, %v1136
      %vm1138 = vweird.f32 %v1132
      %vm1139 = vweird.f32 %v1133
      %vm1140 = vmor %vm1138, %vm1139
      %v1141 = vsel %vm1140, %v1133, %v1137
      %v1142 = vand.u32 2147483647, %v1132
      %vm1143 = vcmp.eq.f32.partialorder %v1142, 8.507059e+37
      %v1144 = vand.u32 %v1132, 2147483648
      %v1145 = vor.u32 1.1754944e-38, %v1144
      %v1146 = vsel %vm1143, %v1145, %v1141
      %v1147 = vmul.f32 1.0, %v1146
      %v1148 = vtanh.pop %v1128
      %v1149 = vmul.f32 %v1147, %v1095
      %1151 = vrot.lane.b32.xlu0 %v1148, 64
      %v1152 = vpop.permute.xlu0 %1151
      %v1154 = vmul.f32 %v1147, %v1152
      %1156 = vrot.lane.b32.xlu0 %v1154, 32
      %v1157 = vpop.permute.xlu0 %1156
      %v1159 = vadd.f32 %v1149, %v1157
      %v1160 = vtanh.pop %v1159
      %1162 = vrot.lane.b32.xlu0 %v1160, 64
      %v1163 = vpop.permute.xlu0 %1162
      %v1165 = vmul.f32 %v1147, %v1163
      %1167 = vrot.lane.b32.xlu0 %v1165, 32
      %v1168 = vpop.permute.xlu0 %1167
      %s1170 = scalar_lea.vmem [#allocation4], 24
      %1171 = vst.msk [vmem:[%s1170] sm:$0xff] %vm583, %v1168
      %1172 = vst.msk [vmem:[%s900] sm:$0xff] %vm583, %v1168
      %1174 = vrot.lane.b32.xlu0 %v1159, 96
      %v1175 = vpop.permute.xlu0 %1174
      %1177 = vst.msk [vmem:[%s902] sm:$0xff] %vm583, %v1175
      %v1178 = vld [vmem:[#allocation4] sm:$0xff]
      %v1179 = vld [vmem:[#allocation4 + $0x8] sm:$0xff]
      %v1180 = vld [vmem:[#allocation4 + $0x10] sm:$0xff]
      %v1181 = vld [vmem:[#allocation4 + $0x18] sm:$0xff]
      %v1182 = vpack.c.bf16 %v1179, %v1178
      %v1183 = vpack.c.bf16 %v1181, %v1180
      %v1184 = vld [vmem:[%s7] sm:$0xf]
      %v1185 = vld [vmem:[%s7 + $0x4] sm:$0xf]
      %v1186 = vld [vmem:[%s7 + $0x8] sm:$0xf]
      %v1187 = vld [vmem:[%s7 + $0xc] sm:$0xf]
      %v1188 = vld [vmem:[%s9] sm:$0x1]
      %v1190 = vperm.slane %v1188, 0
      %v1196 = vunpack.c.l.b16 %v1184
      %v1197 = vunpack.c.l.b16 %v1185
      %v1198 = vunpack.c.l.b16 %v1186
      %v1199 = vunpack.c.l.b16 %v1187
      %v1200 = vpack.c.b16 %v1197, %v1196
      %v1201 = vpack.c.b16 %v1199, %v1198
      %v1205 = vsel %vm583, %v1182, 0
      %v1208 = vsel %vm583, %v1183, 0
      %1210 = vmatpush.bf16.msra.mxu0 0
      %1211 = vmatpush.bf16.msra.mxu0 0
      %1212 = vmatpush.bf16.msra.mxu0 0
      %1213 = vmatpush.bf16.msra.mxu0 0
      %1214 = vmatpush.bf16.msra.mxu0 0
      %1215 = vmatpush.bf16.msra.mxu0 0
      %1216 = vmatpush.bf16.msra.mxu0 %v1201
      %1217 = vmatpush.bf16.msra.mxu0 %v1200
      %1218 = vmatmul.bf16.gmra.mxu0 %v1205
      %v1219 = vpop.f32.mrf.mxu0
      %v1220 = vadd.f32 %v1190, %v1219
      %v1221 = vpop.f32.mrf.mxu0
      %v1222 = vadd.f32 %v1190, %v1221
      %1223 = vmatmul.bf16.gmra.mxu0 %v1208
      %v1224 = vpop.f32.mrf.mxu0
      %v1225 = vadd.f32 %v1190, %v1224
      %v1226 = vpop.f32.mrf.mxu0
      %v1227 = vadd.f32 %v1190, %v1226
      %1228 = vdwg.mxu0
      %v1229 = vld [vmem:[%s8] sm:$0xf]
      %v1230 = vld [vmem:[%s8 + $0x4] sm:$0xf]
      %v1231 = vld [vmem:[%s8 + $0x8] sm:$0xf]
      %v1232 = vld [vmem:[%s8 + $0xc] sm:$0xf]
      %s1233 = scalar_lea.vmem [#allocation5], 16
      %v1234 = vld [vmem:[%s1233] sm:$0xff]
      %s1235 = scalar_lea.vmem [#allocation6], 16
      %v1236 = vld [vmem:[%s1235] sm:$0xff]
      %v1237 = vpack.c.bf16 %v1234, %v1234
      %v1242 = vunpack.c.l.b16 %v1229
      %v1243 = vunpack.c.l.b16 %v1230
      %v1244 = vunpack.c.l.b16 %v1231
      %v1245 = vunpack.c.l.b16 %v1232
      %v1246 = vpack.c.b16 %v1243, %v1242
      %v1247 = vpack.c.b16 %v1245, %v1244
      %v1251 = vsel %vm583, %v1237, 0
      %1253 = vmatpush.bf16.msra.mxu0 0
      %1254 = vmatpush.bf16.msra.mxu0 0
      %1255 = vmatpush.bf16.msra.mxu0 0
      %1256 = vmatpush.bf16.msra.mxu0 0
      %1257 = vmatpush.bf16.msra.mxu0 0
      %1258 = vmatpush.bf16.msra.mxu0 0
      %1259 = vmatpush.bf16.msra.mxu0 %v1247
      %1260 = vmatpush.bf16.msra.mxu0 %v1246
      %1261 = vmatmul.bf16.gmra.mxu0 %v1251
      %v1262 = vpop.f32.mrf.mxu0
      %v1263 = vadd.f32 0.0, %v1262
      %v1264 = vpop.f32.mrf.mxu0
      %1265 = vdwg.mxu0
      %v1266 = vadd.f32 %v1220, %v1263
      %v1267 = vxor.u32 %v1266, 2147483648
      %v1268 = vmul.f32 %v1267, 1.442695
      %v1269 = vpow.pop %v1268
      %v1270 = vadd.f32 %v1269, 1.0
      %v1271 = vrcp.pop %v1270
      %v1272 = vmul.f32 %v1270, %v1271
      %v1273 = vsub.f32 1.0, %v1272
      %v1274 = vmul.f32 %v1271, %v1273
      %v1275 = vadd.f32 %v1271, %v1274
      %vm1276 = vweird.f32 %v1270
      %vm1277 = vweird.f32 %v1271
      %vm1278 = vmor %vm1276, %vm1277
      %v1279 = vsel %vm1278, %v1271, %v1275
      %v1280 = vand.u32 2147483647, %v1270
      %vm1281 = vcmp.eq.f32.partialorder %v1280, 8.507059e+37
      %v1282 = vand.u32 %v1270, 2147483648
      %v1283 = vor.u32 1.1754944e-38, %v1282
      %v1284 = vsel %vm1281, %v1283, %v1279
      %v1285 = vmul.f32 1.0, %v1284
      %v1286 = vtanh.pop %v1266
      %1288 = vrot.lane.b32.xlu0 %v1236, 32
      %v1289 = vpop.permute.xlu0 %1288
      %v1291 = vmul.f32 %v1285, %v1289
      %1293 = vrot.lane.b32.xlu0 %v1286, 64
      %v1294 = vpop.permute.xlu0 %1293
      %v1296 = vmul.f32 %v1285, %v1294
      %1298 = vrot.lane.b32.xlu0 %v1296, 32
      %v1299 = vpop.permute.xlu0 %1298
      %v1301 = vadd.f32 %v1291, %v1299
      %v1302 = vtanh.pop %v1301
      %1304 = vrot.lane.b32.xlu0 %v1302, 64
      %v1305 = vpop.permute.xlu0 %1304
      %v1307 = vmul.f32 %v1285, %v1305
      %1309 = vrot.lane.b32.xlu0 %v1307, 32
      %v1310 = vpop.permute.xlu0 %1309
      %1312 = vst.msk [vmem:[#allocation3] sm:$0xff] %vm583, %v1310
      %v1313 = vpack.c.bf16 %v1307, %v1307
      %1315 = vrot.lane.b32.xlu0 %v1313, 32
      %v1316 = vpop.permute.xlu0 %1315
      %v1318 = vsel %vm583, %v1316, 0
      %1320 = vmatpush.bf16.msra.mxu0 0
      %1321 = vmatpush.bf16.msra.mxu0 0
      %1322 = vmatpush.bf16.msra.mxu0 0
      %1323 = vmatpush.bf16.msra.mxu0 0
      %1324 = vmatpush.bf16.msra.mxu0 0
      %1325 = vmatpush.bf16.msra.mxu0 0
      %1326 = vmatpush.bf16.msra.mxu0 %v1247
      %1327 = vmatpush.bf16.msra.mxu0 %v1246
      %1328 = vmatmul.bf16.gmra.mxu0 %v1318
      %v1329 = vpop.f32.mrf.mxu0
      %v1330 = vadd.f32 0.0, %v1329
      %v1331 = vpop.f32.mrf.mxu0
      %1332 = vdwg.mxu0
      %v1333 = vadd.f32 %v1222, %v1330
      %v1334 = vxor.u32 %v1333, 2147483648
      %v1335 = vmul.f32 %v1334, 1.442695
      %v1336 = vpow.pop %v1335
      %v1337 = vadd.f32 %v1336, 1.0
      %v1338 = vrcp.pop %v1337
      %v1339 = vmul.f32 %v1337, %v1338
      %v1340 = vsub.f32 1.0, %v1339
      %v1341 = vmul.f32 %v1338, %v1340
      %v1342 = vadd.f32 %v1338, %v1341
      %vm1343 = vweird.f32 %v1337
      %vm1344 = vweird.f32 %v1338
      %vm1345 = vmor %vm1343, %vm1344
      %v1346 = vsel %vm1345, %v1338, %v1342
      %v1347 = vand.u32 2147483647, %v1337
      %vm1348 = vcmp.eq.f32.partialorder %v1347, 8.507059e+37
      %v1349 = vand.u32 %v1337, 2147483648
      %v1350 = vor.u32 1.1754944e-38, %v1349
      %v1351 = vsel %vm1348, %v1350, %v1346
      %v1352 = vmul.f32 1.0, %v1351
      %v1353 = vtanh.pop %v1333
      %v1354 = vmul.f32 %v1352, %v1301
      %1356 = vrot.lane.b32.xlu0 %v1353, 64
      %v1357 = vpop.permute.xlu0 %1356
      %v1359 = vmul.f32 %v1352, %v1357
      %1361 = vrot.lane.b32.xlu0 %v1359, 32
      %v1362 = vpop.permute.xlu0 %1361
      %v1364 = vadd.f32 %v1354, %v1362
      %v1365 = vtanh.pop %v1364
      %1367 = vrot.lane.b32.xlu0 %v1365, 64
      %v1368 = vpop.permute.xlu0 %1367
      %v1370 = vmul.f32 %v1352, %v1368
      %1372 = vrot.lane.b32.xlu0 %v1370, 32
      %v1373 = vpop.permute.xlu0 %1372
      %1375 = vst.msk [vmem:[%s709] sm:$0xff] %vm583, %v1373
      %v1376 = vpack.c.bf16 %v1370, %v1370
      %1378 = vrot.lane.b32.xlu0 %v1376, 32
      %v1379 = vpop.permute.xlu0 %1378
      %v1381 = vsel %vm583, %v1379, 0
      %1383 = vmatpush.bf16.msra.mxu0 0
      %1384 = vmatpush.bf16.msra.mxu0 0
      %1385 = vmatpush.bf16.msra.mxu0 0
      %1386 = vmatpush.bf16.msra.mxu0 0
      %1387 = vmatpush.bf16.msra.mxu0 0
      %1388 = vmatpush.bf16.msra.mxu0 0
      %1389 = vmatpush.bf16.msra.mxu0 %v1247
      %1390 = vmatpush.bf16.msra.mxu0 %v1246
      %1391 = vmatmul.bf16.gmra.mxu0 %v1381
      %v1392 = vpop.f32.mrf.mxu0
      %v1393 = vadd.f32 0.0, %v1392
      %v1394 = vpop.f32.mrf.mxu0
      %1395 = vdwg.mxu0
      %v1396 = vadd.f32 %v1225, %v1393
      %v1397 = vxor.u32 %v1396, 2147483648
      %v1398 = vmul.f32 %v1397, 1.442695
      %v1399 = vpow.pop %v1398
      %v1400 = vadd.f32 %v1399, 1.0
      %v1401 = vrcp.pop %v1400
      %v1402 = vmul.f32 %v1400, %v1401
      %v1403 = vsub.f32 1.0, %v1402
      %v1404 = vmul.f32 %v1401, %v1403
      %v1405 = vadd.f32 %v1401, %v1404
      %vm1406 = vweird.f32 %v1400
      %vm1407 = vweird.f32 %v1401
      %vm1408 = vmor %vm1406, %vm1407
      %v1409 = vsel %vm1408, %v1401, %v1405
      %v1410 = vand.u32 2147483647, %v1400
      %vm1411 = vcmp.eq.f32.partialorder %v1410, 8.507059e+37
      %v1412 = vand.u32 %v1400, 2147483648
      %v1413 = vor.u32 1.1754944e-38, %v1412
      %v1414 = vsel %vm1411, %v1413, %v1409
      %v1415 = vmul.f32 1.0, %v1414
      %v1416 = vtanh.pop %v1396
      %v1417 = vmul.f32 %v1415, %v1364
      %1419 = vrot.lane.b32.xlu0 %v1416, 64
      %v1420 = vpop.permute.xlu0 %1419
      %v1422 = vmul.f32 %v1415, %v1420
      %1424 = vrot.lane.b32.xlu0 %v1422, 32
      %v1425 = vpop.permute.xlu0 %1424
      %v1427 = vadd.f32 %v1417, %v1425
      %v1428 = vtanh.pop %v1427
      %1430 = vrot.lane.b32.xlu0 %v1428, 64
      %v1431 = vpop.permute.xlu0 %1430
      %v1433 = vmul.f32 %v1415, %v1431
      %1435 = vrot.lane.b32.xlu0 %v1433, 32
      %v1436 = vpop.permute.xlu0 %1435
      %1438 = vst.msk [vmem:[%s773] sm:$0xff] %vm583, %v1436
      %v1439 = vpack.c.bf16 %v1433, %v1433
      %1441 = vrot.lane.b32.xlu0 %v1439, 32
      %v1442 = vpop.permute.xlu0 %1441
      %v1444 = vsel %vm583, %v1442, 0
      %1446 = vmatpush.bf16.msra.mxu0 0
      %1447 = vmatpush.bf16.msra.mxu0 0
      %1448 = vmatpush.bf16.msra.mxu0 0
      %1449 = vmatpush.bf16.msra.mxu0 0
      %1450 = vmatpush.bf16.msra.mxu0 0
      %1451 = vmatpush.bf16.msra.mxu0 0
      %1452 = vmatpush.bf16.msra.mxu0 %v1247
      %1453 = vmatpush.bf16.msra.mxu0 %v1246
      %1454 = vmatmul.bf16.gmra.mxu0 %v1444
      %v1455 = vpop.f32.mrf.mxu0
      %v1456 = vadd.f32 0.0, %v1455
      %v1457 = vpop.f32.mrf.mxu0
      %1458 = vdwg.mxu0
      %v1459 = vadd.f32 %v1227, %v1456
      %v1460 = vxor.u32 %v1459, 2147483648
      %v1461 = vmul.f32 %v1460, 1.442695
      %v1462 = vpow.pop %v1461
      %v1463 = vadd.f32 %v1462, 1.0
      %v1464 = vrcp.pop %v1463
      %v1465 = vmul.f32 %v1463, %v1464
      %v1466 = vsub.f32 1.0, %v1465
      %v1467 = vmul.f32 %v1464, %v1466
      %v1468 = vadd.f32 %v1464, %v1467
      %vm1469 = vweird.f32 %v1463
      %vm1470 = vweird.f32 %v1464
      %vm1471 = vmor %vm1469, %vm1470
      %v1472 = vsel %vm1471, %v1464, %v1468
      %v1473 = vand.u32 2147483647, %v1463
      %vm1474 = vcmp.eq.f32.partialorder %v1473, 8.507059e+37
      %v1475 = vand.u32 %v1463, 2147483648
      %v1476 = vor.u32 1.1754944e-38, %v1475
      %v1477 = vsel %vm1474, %v1476, %v1472
      %v1478 = vmul.f32 1.0, %v1477
      %v1479 = vtanh.pop %v1459
      %v1480 = vmul.f32 %v1478, %v1427
      %1482 = vrot.lane.b32.xlu0 %v1479, 64
      %v1483 = vpop.permute.xlu0 %1482
      %v1485 = vmul.f32 %v1478, %v1483
      %1487 = vrot.lane.b32.xlu0 %v1485, 32
      %v1488 = vpop.permute.xlu0 %1487
      %v1490 = vadd.f32 %v1480, %v1488
      %v1491 = vtanh.pop %v1490
      %1493 = vrot.lane.b32.xlu0 %v1491, 64
      %v1494 = vpop.permute.xlu0 %1493
      %v1496 = vmul.f32 %v1478, %v1494
      %1498 = vrot.lane.b32.xlu0 %v1496, 32
      %v1499 = vpop.permute.xlu0 %1498
      %1501 = vst.msk [vmem:[%s837] sm:$0xff] %vm583, %v1499
      %1502 = vst.msk [vmem:[%s1233] sm:$0xff] %vm583, %v1499
      %1504 = vrot.lane.b32.xlu0 %v1490, 96
      %v1505 = vpop.permute.xlu0 %1504
      %1507 = vst.msk [vmem:[%s1235] sm:$0xff] %vm583, %v1505
      %v1508 = vld [vmem:[#allocation3] sm:$0xff]
      %v1509 = vld [vmem:[#allocation3 + $0x8] sm:$0xff]
      %v1510 = vld [vmem:[#allocation3 + $0x10] sm:$0xff]
      %v1511 = vld [vmem:[#allocation3 + $0x18] sm:$0xff]
      %v1512 = vpack.c.bf16 %v1509, %v1508
      %v1513 = vpack.c.bf16 %v1511, %v1510
      %v1514 = vld [vmem:[%s10] sm:$0xf]
      %v1515 = vld [vmem:[%s10 + $0x4] sm:$0xf]
      %v1516 = vld [vmem:[%s10 + $0x8] sm:$0xf]
      %v1517 = vld [vmem:[%s10 + $0xc] sm:$0xf]
      %v1518 = vld [vmem:[%s11] sm:$0x1]
      %v1520 = vperm.slane %v1518, 0
      %v1526 = vunpack.c.l.b16 %v1514
      %v1527 = vunpack.c.l.b16 %v1515
      %v1528 = vunpack.c.l.b16 %v1516
      %v1529 = vunpack.c.l.b16 %v1517
      %v1530 = vpack.c.b16 %v1527, %v1526
      %v1531 = vpack.c.b16 %v1529, %v1528
      %v1535 = vsel %vm583, %v1512, 0
      %v1538 = vsel %vm583, %v1513, 0
      %1540 = vmatpush.bf16.msra.mxu0 0
      %1541 = vmatpush.bf16.msra.mxu0 0
      %1542 = vmatpush.bf16.msra.mxu0 0
      %1543 = vmatpush.bf16.msra.mxu0 0
      %1544 = vmatpush.bf16.msra.mxu0 0
      %1545 = vmatpush.bf16.msra.mxu0 0
      %1546 = vmatpush.bf16.msra.mxu0 %v1531
      %1547 = vmatpush.bf16.msra.mxu0 %v1530
      %1548 = vmatmul.bf16.gmra.mxu0 %v1535
      %v1549 = vpop.f32.mrf.mxu0
      %v1550 = vadd.f32 %v1520, %v1549
      %v1551 = vpop.f32.mrf.mxu0
      %v1552 = vadd.f32 %v1520, %v1551
      %1553 = vmatmul.bf16.gmra.mxu0 %v1538
      %v1554 = vpop.f32.mrf.mxu0
      %v1555 = vadd.f32 %v1520, %v1554
      %v1556 = vpop.f32.mrf.mxu0
      %v1557 = vadd.f32 %v1520, %v1556
      %1558 = vdwg.mxu0
      %v1559 = vmax.f32 %v1550, 0.0
      %v1560 = vmax.f32 %v1552, 0.0
      %v1561 = vmax.f32 %v1555, 0.0
      %v1562 = vmax.f32 %v1557, 0.0
      %v1563 = vpack.c.bf16 %v1560, %v1559
      %v1564 = vpack.c.bf16 %v1562, %v1561
      %v1565 = vld [vmem:[%s12] sm:$0xf]
      %v1566 = vld [vmem:[%s12 + $0x4] sm:$0xf]
      %v1567 = vld [vmem:[%s13] sm:$0x1]
      %v1569 = vperm.slane %v1567, 0
      %v1573 = vunpack.c.l.b16 %v1565
      %v1574 = vunpack.c.l.b16 %v1566
      %v1575 = vpack.c.b16 %v1574, %v1573
      %vm1577 = vcmask 130048
      %v1579 = vsel %vm1577, %v1563, 0
      %v1582 = vsel %vm1577, %v1564, 0
      %1584 = vmatpush.bf16.msra.mxu0 0
      %1585 = vmatpush.bf16.msra.mxu0 0
      %1586 = vmatpush.bf16.msra.mxu0 0
      %1587 = vmatpush.bf16.msra.mxu0 0
      %1588 = vmatpush.bf16.msra.mxu0 0
      %1589 = vmatpush.bf16.msra.mxu0 0
      %1590 = vmatpush.bf16.msra.mxu0 0
      %1591 = vmatpush.bf16.msra.mxu0 %v1575
      %1592 = vmatmul.bf16.gmra.mxu0 %v1579
      %v1593 = vpop.f32.mrf.mxu0
      %v1594 = vadd.f32 %v1569, %v1593
      %v1595 = vpop.f32.mrf.mxu0
      %v1596 = vadd.f32 %v1569, %v1595
      %1597 = vmatmul.bf16.gmra.mxu0 %v1582
      %v1598 = vpop.f32.mrf.mxu0
      %v1599 = vadd.f32 %v1569, %v1598
      %v1600 = vpop.f32.mrf.mxu0
      %v1601 = vadd.f32 %v1569, %v1600
      %1602 = vdwg.mxu0
      %1603 = vst [vmem:[%s500] sm:$0xff] %v1594
      %1604 = vst [vmem:[%s500 + $0x8] sm:$0xff] %v1596
      %1605 = vst [vmem:[%s500 + $0x10] sm:$0xff] %v1599
      %1606 = vst [vmem:[%s500 + $0x18] sm:$0xff] %v1601
      %s1607 = smul.u32 4, %s30
      %p1608 = scmp.lt.s32.totalorder %s1607, 7
      %s1609 = scalar_select %p1608, %s1607, 7
      %p1610 = scmp.lt.s32.totalorder %s29, 0
      %s1611 = scalar_select %p1610, %s29, 0
      %s1612 = sadd.s32 %s1611, %s1609
      %s1613 = smul.addr %s1612, 8
      %s1614 = scalar_lea.vmem %s14, %s1613
      // Predicated region
      $region81: #{imu_generator_forward.1} parent=75 // pred_check
        %p1615 = pneg %p358
      $region82: #{imu_generator_forward.1} parent=75 // pred_check_branch
        %1617 = sbr.rel (%p1615) target = $region84
      $region83: #{imu_generator_forward.1} parent=75 // pred_region
        %s1618 = smul.u32 4, %s30
      $region84: #{imu_generator_forward.1} parent=75 // pred_fallthru
        _
    $region76: #{imu_generator_forward.1} parent=5 // pred_fallthru
      _
    %p1619 = scmp.le.s32.totalorder 2, %s20
    // Predicated region
    $region85: #{imu_generator_forward.1} parent=5 // pred_check
      %p1620 = pneg %p1619
    $region86: #{imu_generator_forward.1} parent=5 // pred_check_branch
      %1622 = sbr.rel (%p1620) target = $region88
    $region87: #{imu_generator_forward.1} parent=5 // pred_region
      %s1623 = ssub.s32 %s20, 2
      // Predicated region
      $region89: #{imu_generator_forward.1} parent=87 // pred_check
        %p1624 = pneg %p364
      $region90: #{imu_generator_forward.1} parent=87 // pred_check_branch
        %1626 = sbr.rel (%p1624) target = $region92
      $region91: #{imu_generator_forward.1} parent=87 // pred_region
        %s1627 = smul.u32 4, %s32
        %p1628 = scmp.lt.s32.totalorder %s1627, 7
        %s1629 = scalar_select %p1628, %s1627, 7
        %p1630 = scmp.lt.s32.totalorder %s31, 0
        %s1631 = scalar_select %p1630, %s31, 0
        %s1632 = sadd.s32 %s1631, %s1629
        %s1633 = smul.addr %s1632, 8
        %s1634 = scalar_lea.vmem %s14, %s1633
      $region92: #{imu_generator_forward.1} parent=87 // pred_fallthru
        _
    $region88: #{imu_generator_forward.1} parent=5 // pred_fallthru
      _
  $region6: #{imu_generator_forward.1} parent=0 // loop_footer
    %s24 = sadd.s32 1, %s20
  $region7: #{imu_generator_forward.1} parent=0 // loop_footer_branch
    %19 = sbr.rel target = $region3
  $region8: #{imu_generator_forward.1} parent=0 // loop_exit
    _

</llo_original>
